<compile_context>
chip_gen: v6e
topology: v6e:2x2x1
jax: 0.10.0
libtpu: 0.0.40
codegen_flags: <defaults>
</compile_context>

<pallas_src>
import functools

import jax
import jax.numpy as jnp
from jax.experimental import pallas as pl
from jax.experimental.pallas import tpu as pltpu

_BN_EPS = 1e-5
_LANE = 128          # TPU lane width: every HBM-visible output is padded to this
_NEG = -1e30


# ----------------------------------------------------------------------------
# Helpers
# ----------------------------------------------------------------------------
def _round_up(x, m):
    return ((x + m - 1) // m) * m


def _choose_tiling(n):
    """Pad node dim to a multiple of 128; keep >=2 row tiles when possible
    so the "parallel" grid axis can shard across v7x's two TensorCores."""
    n_pad = _round_up(max(n, 1), _LANE)
    tm = 64 if n_pad == _LANE else _LANE
    return tm, n_pad


def _vmem_limit_bytes():
    """Generation-aware scoped-VMEM limit (v5e/v6e: 128 MiB phys, v7x: 64 MiB)."""
    cap = 64 * 1024 * 1024
    try:
        cap = int(getattr(pltpu.get_tpu_info(), "vmem_capacity_bytes", cap))
    except Exception:
        pass
    return min(max(cap - 16 * 1024 * 1024, 32 * 1024 * 1024), 112 * 1024 * 1024)


# ----------------------------------------------------------------------------
# Pallas kernels
# ----------------------------------------------------------------------------
def _gat_precompute_kernel(x_ref, w_ref, amat_ref, xp_ref, asrcT_ref, adst_ref,
                           *, num_heads, out_dim):
    """Per dst-row tile: xp = x @ W (head-major) and all-head attention scores.

    x_ref     : [TM, F_in]       node-feature row tile (bf16)
    w_ref     : [F_in, H*C]      linear weight (bf16, full)
    amat_ref  : [H*C, 2*128]     lane-padded block-diag [a_src | a_dst] (f32, full)
    xp_ref    : [H, TM, C]       transformed features, head-major (bf16)
    asrcT_ref : [H, TM]          per-src scores, already transposed (lane-dense)
    adst_ref  : [TM, 128]        per-dst scores in lanes 0:H, zeros after (lane-dense)
    """
    H, C = num_heads, out_dim
    xw = jnp.dot(x_ref[...].astype(jnp.bfloat16), w_ref[...],
                 preferred_element_type=jnp.float32)                  # [TM, H*C] f32
    # One MXU matmul produces every head's src/dst score; amat is lane-padded so
    # both slices below are 128-aligned and the dst store is full-width.
    alpha = jnp.dot(xw, amat_ref[...], preferred_element_type=jnp.float32)
    asrcT_ref[...] = jnp.transpose(alpha[:, :_LANE])[:H, :]           # [H, TM]
    adst_ref[...] = alpha[:, _LANE:]                                  # [TM, 128]
    # Head-major layout so the aggregation kernel's per-head slab is a pure view.
    # TODO(synk): replace the per-head narrow stores with a single
    # reshape/transpose store once the 3-D relayout is validated on all targets.
    for h in range(H):
        xp_ref[h] = xw[:, h * C:(h + 1) * C].astype(jnp.bfloat16)


def _gat_agg_kernel(adj_ref, adst_ref, asrcT_ref, xp_ref, scale_ref, shift_ref,
                    o_ref, acc_ref, *, num_heads, apply_relu):
    """Per (dst-row tile, head): masked softmax attention + aggregation.

    adj_ref   : [TM, N]     int8 mask, adj[i, j] = 1 if edge j -> i (incl. self loop)
    adst_ref  : [TM, 128]   f32 per-dst scores (head h in lane h)
    asrcT_ref : [H, N]      f32 per-src scores (pre-transposed, full, tiny)
    xp_ref    : [1, N, C]   bf16 transformed features of the current head
    scale_ref : [1, Cpad]   fused scale (head-mean 1/H and BN gamma/rsqrt(var))
    shift_ref : [1, Cpad]   fused shift (conv bias, BN beta/mean)
    o_ref     : [TM, Cpad]  output tile (written once, at the last head)
    acc_ref   : [TM, Cpad]  f32 VMEM accumulator across the head axis
    """
    h = pl.program_id(1)
    C = xp_ref.shape[2]

    @pl.when(h == 0)
    def _init():
        acc_ref[...] = jnp.zeros_like(acc_ref)

    # Additive mask from the int8 adjacency (0 for edges, -1e30 otherwise).
    mask_bias = jnp.where(adj_ref[...] > 0, jnp.float32(0.0), jnp.float32(_NEG))

    # Per-head score extraction via one-hot reductions (no dynamic lane slicing).
    lane = jax.lax.broadcasted_iota(jnp.int32, (1, adst_ref.shape[1]), 1)
    a_d = jnp.sum(adst_ref[...] * (lane == h).astype(jnp.float32),
                  axis=1, keepdims=True)                              # [TM, 1]
    row = jax.lax.broadcasted_iota(jnp.int32, (asrcT_ref.shape[0], 1), 0)
    a_s = jnp.sum(asrcT_ref[...] * (row == h).astype(jnp.float32),
                  axis=0, keepdims=True)                              # [1, N]

    # e[i, j] = leaky_relu(alpha_dst[i] + alpha_src[j], slope=0.2), masked.
    e = a_d + a_s                                                     # [TM, N] f32
    e = jnp.maximum(e, jnp.float32(0.2) * e) + mask_bias

    # Softmax over incoming edges; normalize AFTER the matmul (EUP reciprocal on
    # [TM, 1] instead of N^2 divides).
    m = jnp.max(e, axis=1, keepdims=True)
    p = jnp.exp(e - m)
    r = pl.reciprocal(jnp.sum(p, axis=1, keepdims=True), approx=True)
    pv = jnp.dot(p.astype(jnp.bfloat16), xp_ref[0],
                 preferred_element_type=jnp.float32)                  # [TM, C]
    acc_ref[:, :C] = acc_ref[:, :C] + r * pv

    @pl.when(h == num_heads - 1)
    def _finalize():
        # Fused epilogue: head-mean + conv bias + inference BatchNorm (+ ReLU).
        out = acc_ref[...] * scale_ref[...] + shift_ref[...]
        if apply_relu:
            out = jnp.maximum(out, jnp.float32(0.0))
        o_ref[...] = out.astype(o_ref.dtype)


def _linear_kernel(x_ref, w_ref, b_ref, o_ref):
    """doc_projection: y = x @ W + b (bf16 inputs, f32 accumulate)."""
    o_ref[...] = jnp.dot(x_ref[...].astype(jnp.bfloat16),
                         w_ref[...].astype(jnp.bfloat16),
                         preferred_element_type=jnp.float32) + b_ref[...]


# ----------------------------------------------------------------------------
# Wrappers
# ----------------------------------------------------------------------------
def gat_conv_layer(x, adj, conv, scale_pad, shift_pad, *, apply_relu, out_dtype, tm):
    """One GATConv layer (concat=False) with fused BN/ReLU epilogue."""
    n_pad, f_in = x.shape
    H = conv["heads"]
    hc = conv["w"].shape[1]
    C = hc // H
    cpad = _round_up(C, _LANE)

    w = conv["w"]
    if w.shape[0] < f_in:                      # activations are lane-padded to 128
        w = jnp.pad(w, ((0, f_in - w.shape[0]), (0, 0)))
    w = w.astype(jnp.bfloat16)                 # pre-cast: bf16 MXU path, less HBM
    amat = conv["amat"]                        # [hc, 2*_LANE] f32

    grid_rows = n_pad // tm
    vmem_limit = _vmem_limit_bytes()

    # --- pass 1: xp (head-major) + all-head attention scores, per row tile ----
    xp, a_srcT, a_dst = pl.pallas_call(
        functools.partial(_gat_precompute_kernel, num_heads=H, out_dim=C),
        out_shape=(jax.ShapeDtypeStruct((H, n_pad, C), jnp.bfloat16),
                   jax.ShapeDtypeStruct((H, n_pad), jnp.float32),
                   jax.ShapeDtypeStruct((n_pad, _LANE), jnp.float32)),
        grid=(grid_rows,),
        in_specs=[pl.BlockSpec((tm, f_in), lambda i: (i, 0)),
                  pl.BlockSpec((f_in, hc), lambda i: (0, 0)),
                  pl.BlockSpec((hc, 2 * _LANE), lambda i: (0, 0))],
        out_specs=(pl.BlockSpec((H, tm, C), lambda i: (0, i, 0)),
                   pl.BlockSpec((H, tm), lambda i: (0, i)),
                   pl.BlockSpec((tm, _LANE), lambda i: (i, 0))),
        compiler_params=pltpu.CompilerParams(
            dimension_semantics=("parallel",),
            vmem_limit_bytes=vmem_limit),
    )(x, w, amat)

    # --- pass 2: masked softmax attention, grid over (row tiles, heads) -------
    out = pl.pallas_call(
        functools.partial(_gat_agg_kernel, num_heads=H, apply_relu=apply_relu),
        out_shape=jax.ShapeDtypeStruct((n_pad, cpad), out_dtype),
        grid=(grid_rows, H),
        in_specs=[pl.BlockSpec((tm, n_pad), lambda i, h: (i, 0)),        # adj (int8)
                  pl.BlockSpec((tm, _LANE), lambda i, h: (i, 0)),        # alpha_dst
                  pl.BlockSpec((H, n_pad), lambda i, h: (0, 0)),         # alpha_srcT
                  pl.BlockSpec((1, n_pad, C), lambda i, h: (h, 0, 0)),   # xp, head h
                  pl.BlockSpec((1, cpad), lambda i, h: (0, 0)),          # fused scale
                  pl.BlockSpec((1, cpad), lambda i, h: (0, 0))],         # fused shift
        out_specs=pl.BlockSpec((tm, cpad), lambda i, h: (i, 0)),
        scratch_shapes=[pltpu.VMEM((tm, cpad), jnp.float32)],
        compiler_params=pltpu.CompilerParams(
            dimension_semantics=("parallel", "arbitrary"),
            vmem_limit_bytes=vmem_limit),
    )(adj, a_dst, a_srcT, xp, scale_pad, shift_pad)
    return out


def linear_projection(x, w, b):
    """doc_projection with a lane-dense (128-padded) output."""
    out_ch = w.shape[1]
    cpad = _round_up(out_ch, _LANE)
    if cpad != out_ch:
        w = jnp.pad(w, ((0, 0), (0, cpad - out_ch)))
        b = jnp.pad(b, ((0, 0), (0, cpad - out_ch)))
    vmem = pl.BlockSpec(memory_space=pltpu.MemorySpace.VMEM)
    y = pl.pallas_call(
        _linear_kernel,
        out_shape=jax.ShapeDtypeStruct((x.shape[0], cpad), jnp.float32),
        in_specs=[vmem, vmem, vmem],
        out_specs=vmem,
    )(x, w, b)
    return y[:, :out_ch]


def build_adjacency(edge_index, num_nodes, n_pad):
    """Dense int8 mask adj[dst, src] = 1, with self-loops (GATConv default)."""
    src, dst = edge_index[0], edge_index[1]
    adj = jnp.zeros((n_pad, n_pad), jnp.float32).at[dst, src].set(1.0)
    diag = jnp.arange(num_nodes)
    adj = adj.at[diag, diag].set(1.0)   # remove_self_loops + add_self_loops
    # TODO(synk): duplicate edges collapse to a single entry in the dense mask.
    return adj.astype(jnp.int8)


def gat_model_forward(x, edge_index, convs, bns):
    """GATModel.forward (inference): conv -> BN -> ReLU -> dropout(id) ... -> conv."""
    n = x.shape[0]
    tm, n_pad = _choose_tiling(n)
    adj = build_adjacency(edge_index, n, n_pad)
    if n_pad != n:
        x = jnp.pad(x, ((0, n_pad - n), (0, 0)))
    h = x.astype(jnp.bfloat16)                  # bf16 activations between layers

    n_layers = len(convs)
    for i, conv in enumerate(convs):
        H = conv["heads"]
        C = conv["w"].shape[1] // H
        cpad = _round_up(C, _LANE)
        last = i == n_layers - 1
        if not last:
            bn = bns[i]
            g = bn["gamma"] / jnp.sqrt(bn["running_var"] + _BN_EPS)   # [1, C]
            scale = g / H
            shift = conv["bias"] * g + bn["beta"] - bn["running_mean"] * g
        else:
            scale = jnp.full((1, C), 1.0 / H, jnp.float32)
            shift = conv["bias"]
        scale = jnp.pad(scale.astype(jnp.float32), ((0, 0), (0, cpad - C)))
        shift = jnp.pad(shift.astype(jnp.float32), ((0, 0), (0, cpad - C)))
        h = gat_conv_layer(h, adj, conv, scale, shift,
                           apply_relu=not last,
                           out_dtype=jnp.float32 if last else jnp.bfloat16,
                           tm=tm)
        # F.dropout(training=False) -> identity
    out_ch = convs[-1]["w"].shape[1] // convs[-1]["heads"]
    return h[:n, :out_ch]


def gat_forward(ques_x, edge_index, doc, convs, bns, proj):
    """GAT.forward: (GATModel(ques), Linear(3072, out)(doc))."""
    ques_node = gat_model_forward(ques_x, edge_index, convs, bns)
    doc_emb = linear_projection(doc, proj["w"], proj["b"])
    return ques_node, doc_emb


# ----------------------------------------------------------------------------
# Parameter construction (deterministic)
# ----------------------------------------------------------------------------
def _build_attention_matrix(a_src, a_dst):
    """Lane-padded block-diag [H*C, 2*128]: cols 0:H = a_src, cols 128:128+H = a_dst."""
    heads, c = a_src.shape
    amat = jnp.zeros((heads * c, 2 * _LANE), jnp.float32)
    for h in range(heads):
        amat = amat.at[h * c:(h + 1) * c, h].set(a_src[h])
        amat = amat.at[h * c:(h + 1) * c, _LANE + h].set(a_dst[h])
    return amat


def init_params(key, in_channels, hidden_channels, out_channels, num_layers,
                num_heads):
    """Shapes mirror GAT.__init__ (first GAT layer heads=8, rest heads=num_heads)."""
    layer_dims = [(in_channels, hidden_channels, 8)]
    for _ in range(num_layers - 2):
        layer_dims.append((hidden_channels, hidden_channels, num_heads))
    layer_dims.append((hidden_channels, out_channels, num_heads))

    convs = []
    for (f_in, f_out, heads) in layer_dims:
        key, k1, k2, k3 = jax.random.split(key, 4)
        w = 0.1 * jax.random.normal(k1, (f_in, heads * f_out), jnp.float32)
        a_src = 0.1 * jax.random.normal(k2, (heads, f_out), jnp.float32)
        a_dst = 0.1 * jax.random.normal(k3, (heads, f_out), jnp.float32)
        convs.append(dict(
            heads=heads, w=w, amat=_build_attention_matrix(a_src, a_dst),
            bias=jnp.zeros((1, f_out), jnp.float32)))

    bns = []
    for _ in range(num_layers - 1):
        bns.append(dict(
            gamma=jnp.ones((1, hidden_channels), jnp.float32),
            beta=jnp.zeros((1, hidden_channels), jnp.float32),
            running_mean=jnp.zeros((1, hidden_channels), jnp.float32),
            running_var=jnp.ones((1, hidden_channels), jnp.float32)))

    key, kp = jax.random.split(key)
    proj = dict(w=0.02 * jax.random.normal(kp, (3072, out_channels), jnp.float32),
                b=jnp.zeros((1, out_channels), jnp.float32))
    return convs, bns, proj


# ----------------------------------------------------------------------------
if __name__ == "__main__":
    N_NODES, N_EDGES = 200, 600          # padded to 256 -> two 128-row tiles/layer
    IN_CH, HIDDEN_CH, OUT_CH = 16, 32, 8
    NUM_LAYERS, NUM_HEADS = 3, 8         # dropout unused in eval mode
    DOC_BATCH, DOC_DIM = 2, 3072

    key = jax.random.PRNGKey(0)
    kx, ks, kd, kdoc, kp = jax.random.split(key, 5)

    x = jax.random.normal(kx, (N_NODES, IN_CH), jnp.float32)
    edge_index = jnp.stack([
        jax.random.randint(ks, (N_EDGES,), 0, N_NODES),   # row 0 = source
        jax.random.randint(kd, (N_EDGES,), 0, N_NODES),   # row 1 = target
    ], axis=0)
    doc = jax.random.normal(kdoc, (DOC_BATCH, DOC_DIM), jnp.float32)

    convs, bns, proj = init_params(kp, IN_CH, HIDDEN_CH, OUT_CH, NUM_LAYERS,
                                   NUM_HEADS)

    ques_node, doc_emb = gat_forward(x, edge_index, doc, convs, bns, proj)
    jax.block_until_ready((ques_node, doc_emb))

    assert ques_node.shape == (N_NODES, OUT_CH), ques_node.shape
    assert doc_emb.shape == (DOC_BATCH, OUT_CH), doc_emb.shape
    assert bool(jnp.all(jnp.isfinite(ques_node))) and bool(jnp.all(jnp.isfinite(doc_emb)))
    print("KERNEL_OK")
</pallas_src>

<mosaic_0001>
module attributes {stable_mosaic.version = 11 : i64} {
  func.func @_gat_precompute_kernel(%arg0: i32, %arg1: memref<128x16xbf16, #tpu.memory_space<vmem>>, %arg2: memref<16x256xbf16, #tpu.memory_space<vmem>>, %arg3: memref<256x256xf32, #tpu.memory_space<vmem>>, %arg4: memref<8x128x32xbf16, #tpu.memory_space<vmem>>, %arg5: memref<8x128xf32, #tpu.memory_space<vmem>>, %arg6: memref<128x128xf32, #tpu.memory_space<vmem>>) attributes {dimension_semantics = [#tpu.dimension_semantics<parallel>], iteration_bounds = array<i64: 2>, scalar_prefetch = 0 : i64, scratch_operands = 0 : i64, tpu.core_type = #tpu.core_type<tc>, window_params = [{transform_indices = @transform_0, window_bounds = array<i64: 128, 16>}, {pipeline_mode = #tpu.pipeline_mode<synchronous>, transform_indices = @transform_1, window_bounds = array<i64: 16, 256>}, {pipeline_mode = #tpu.pipeline_mode<synchronous>, transform_indices = @transform_2, window_bounds = array<i64: 256, 256>}, {transform_indices = @transform_3, window_bounds = array<i64: 8, 128, 32>}, {transform_indices = @transform_4, window_bounds = array<i64: 8, 128>}, {transform_indices = @transform_5, window_bounds = array<i64: 128, 128>}]} {
    %c0 = arith.constant 0 : index
    %c0_0 = arith.constant 0 : index
    %0 = vector.load %arg1[%c0, %c0_0] : memref<128x16xbf16, #tpu.memory_space<vmem>>, vector<128x16xbf16>
    %c0_1 = arith.constant 0 : index
    %c0_2 = arith.constant 0 : index
    %1 = vector.load %arg2[%c0_1, %c0_2] : memref<16x256xbf16, #tpu.memory_space<vmem>>, vector<16x256xbf16>
    %cst = arith.constant dense<0.000000e+00> : vector<128x256xf32>
    %2 = tpu.matmul %0, %1, %cst {dimension_numbers = #tpu.dot_dimension_numbers<[1], [0], [0], [1], [0, 0, 1, 1], [], []>} : vector<128x16xbf16>, vector<16x256xbf16>, vector<128x256xf32> -> vector<128x256xf32>
    %c0_3 = arith.constant 0 : index
    %c0_4 = arith.constant 0 : index
    %3 = vector.load %arg3[%c0_3, %c0_4] : memref<256x256xf32, #tpu.memory_space<vmem>>, vector<256x256xf32>
    %cst_5 = arith.constant dense<0.000000e+00> : vector<128x256xf32>
    %4 = tpu.matmul %2, %3, %cst_5 {dimension_numbers = #tpu.dot_dimension_numbers<[1], [0], [0], [1], [0, 0, 1, 1], [], []>} : vector<128x256xf32>, vector<256x256xf32>, vector<128x256xf32> -> vector<128x256xf32>
    %5 = vector.extract_strided_slice %4 {offsets = [0, 0], sizes = [128, 128], strides = [1, 1]} : vector<128x256xf32> to vector<128x128xf32>
    %6 = tpu.transpose %5, [1, 0] : vector<128x128xf32> -> vector<128x128xf32>
    %7 = vector.extract_strided_slice %6 {offsets = [0, 0], sizes = [8, 128], strides = [1, 1]} : vector<128x128xf32> to vector<8x128xf32>
    %c0_6 = arith.constant 0 : index
    %c0_7 = arith.constant 0 : index
    %8 = vector.load %arg5[%c0_6, %c0_7] : memref<8x128xf32, #tpu.memory_space<vmem>>, vector<8x128xf32>
    tpu.vector_store %arg5[%c0_6, %c0_7], %7 {strides = array<i32>} : memref<8x128xf32, #tpu.memory_space<vmem>>, vector<8x128xf32>,
    %9 = vector.extract_strided_slice %4 {offsets = [0, 128], sizes = [128, 128], strides = [1, 1]} : vector<128x256xf32> to vector<128x128xf32>
    %c0_8 = arith.constant 0 : index
    %c0_9 = arith.constant 0 : index
    %10 = vector.load %arg6[%c0_8, %c0_9] : memref<128x128xf32, #tpu.memory_space<vmem>>, vector<128x128xf32>
    tpu.vector_store %arg6[%c0_8, %c0_9], %9 {strides = array<i32>} : memref<128x128xf32, #tpu.memory_space<vmem>>, vector<128x128xf32>,
    %11 = vector.extract_strided_slice %2 {offsets = [0, 0], sizes = [128, 32], strides = [1, 1]} : vector<128x256xf32> to vector<128x32xf32>
    %12 = arith.truncf %11 : vector<128x32xf32> to vector<128x32xbf16>
    %c0_10 = arith.constant 0 : index
    %c0_11 = arith.constant 0 : index
    %c0_12 = arith.constant 0 : index
    %13 = vector.load %arg4[%c0_10, %c0_11, %c0_12] : memref<8x128x32xbf16, #tpu.memory_space<vmem>>, vector<1x128x32xbf16>
    %14 = vector.shape_cast %13 : vector<1x128x32xbf16> to vector<128x32xbf16>
    %15 = vector.shape_cast %12 : vector<128x32xbf16> to vector<1x128x32xbf16>
    tpu.vector_store %arg4[%c0_10, %c0_11, %c0_12], %15 {strides = array<i32>} : memref<8x128x32xbf16, #tpu.memory_space<vmem>>, vector<1x128x32xbf16>,
    %16 = vector.extract_strided_slice %2 {offsets = [0, 32], sizes = [128, 32], strides = [1, 1]} : vector<128x256xf32> to vector<128x32xf32>
    %17 = arith.truncf %16 : vector<128x32xf32> to vector<128x32xbf16>
    %c1 = arith.constant 1 : index
    %c0_13 = arith.constant 0 : index
    %c0_14 = arith.constant 0 : index
    %18 = vector.load %arg4[%c1, %c0_13, %c0_14] : memref<8x128x32xbf16, #tpu.memory_space<vmem>>, vector<1x128x32xbf16>
    %19 = vector.shape_cast %18 : vector<1x128x32xbf16> to vector<128x32xbf16>
    %20 = vector.shape_cast %17 : vector<128x32xbf16> to vector<1x128x32xbf16>
    tpu.vector_store %arg4[%c1, %c0_13, %c0_14], %20 {strides = array<i32>} : memref<8x128x32xbf16, #tpu.memory_space<vmem>>, vector<1x128x32xbf16>,
    %21 = vector.extract_strided_slice %2 {offsets = [0, 64], sizes = [128, 32], strides = [1, 1]} : vector<128x256xf32> to vector<128x32xf32>
    %22 = arith.truncf %21 : vector<128x32xf32> to vector<128x32xbf16>
    %c2 = arith.constant 2 : index
    %c0_15 = arith.constant 0 : index
    %c0_16 = arith.constant 0 : index
    %23 = vector.load %arg4[%c2, %c0_15, %c0_16] : memref<8x128x32xbf16, #tpu.memory_space<vmem>>, vector<1x128x32xbf16>
    %24 = vector.shape_cast %23 : vector<1x128x32xbf16> to vector<128x32xbf16>
    %25 = vector.shape_cast %22 : vector<128x32xbf16> to vector<1x128x32xbf16>
    tpu.vector_store %arg4[%c2, %c0_15, %c0_16], %25 {strides = array<i32>} : memref<8x128x32xbf16, #tpu.memory_space<vmem>>, vector<1x128x32xbf16>,
    %26 = vector.extract_strided_slice %2 {offsets = [0, 96], sizes = [128, 32], strides = [1, 1]} : vector<128x256xf32> to vector<128x32xf32>
    %27 = arith.truncf %26 : vector<128x32xf32> to vector<128x32xbf16>
    %c3 = arith.constant 3 : index
    %c0_17 = arith.constant 0 : index
    %c0_18 = arith.constant 0 : index
    %28 = vector.load %arg4[%c3, %c0_17, %c0_18] : memref<8x128x32xbf16, #tpu.memory_space<vmem>>, vector<1x128x32xbf16>
    %29 = vector.shape_cast %28 : vector<1x128x32xbf16> to vector<128x32xbf16>
    %30 = vector.shape_cast %27 : vector<128x32xbf16> to vector<1x128x32xbf16>
    tpu.vector_store %arg4[%c3, %c0_17, %c0_18], %30 {strides = array<i32>} : memref<8x128x32xbf16, #tpu.memory_space<vmem>>, vector<1x128x32xbf16>,
    %31 = vector.extract_strided_slice %2 {offsets = [0, 128], sizes = [128, 32], strides = [1, 1]} : vector<128x256xf32> to vector<128x32xf32>
    %32 = arith.truncf %31 : vector<128x32xf32> to vector<128x32xbf16>
    %c4 = arith.constant 4 : index
    %c0_19 = arith.constant 0 : index
    %c0_20 = arith.constant 0 : index
    %33 = vector.load %arg4[%c4, %c0_19, %c0_20] : memref<8x128x32xbf16, #tpu.memory_space<vmem>>, vector<1x128x32xbf16>
    %34 = vector.shape_cast %33 : vector<1x128x32xbf16> to vector<128x32xbf16>
    %35 = vector.shape_cast %32 : vector<128x32xbf16> to vector<1x128x32xbf16>
    tpu.vector_store %arg4[%c4, %c0_19, %c0_20], %35 {strides = array<i32>} : memref<8x128x32xbf16, #tpu.memory_space<vmem>>, vector<1x128x32xbf16>,
    %36 = vector.extract_strided_slice %2 {offsets = [0, 160], sizes = [128, 32], strides = [1, 1]} : vector<128x256xf32> to vector<128x32xf32>
    %37 = arith.truncf %36 : vector<128x32xf32> to vector<128x32xbf16>
    %c5 = arith.constant 5 : index
    %c0_21 = arith.constant 0 : index
    %c0_22 = arith.constant 0 : index
    %38 = vector.load %arg4[%c5, %c0_21, %c0_22] : memref<8x128x32xbf16, #tpu.memory_space<vmem>>, vector<1x128x32xbf16>
    %39 = vector.shape_cast %38 : vector<1x128x32xbf16> to vector<128x32xbf16>
    %40 = vector.shape_cast %37 : vector<128x32xbf16> to vector<1x128x32xbf16>
    tpu.vector_store %arg4[%c5, %c0_21, %c0_22], %40 {strides = array<i32>} : memref<8x128x32xbf16, #tpu.memory_space<vmem>>, vector<1x128x32xbf16>,
    %41 = vector.extract_strided_slice %2 {offsets = [0, 192], sizes = [128, 32], strides = [1, 1]} : vector<128x256xf32> to vector<128x32xf32>
    %42 = arith.truncf %41 : vector<128x32xf32> to vector<128x32xbf16>
    %c6 = arith.constant 6 : index
    %c0_23 = arith.constant 0 : index
    %c0_24 = arith.constant 0 : index
    %43 = vector.load %arg4[%c6, %c0_23, %c0_24] : memref<8x128x32xbf16, #tpu.memory_space<vmem>>, vector<1x128x32xbf16>
    %44 = vector.shape_cast %43 : vector<1x128x32xbf16> to vector<128x32xbf16>
    %45 = vector.shape_cast %42 : vector<128x32xbf16> to vector<1x128x32xbf16>
    tpu.vector_store %arg4[%c6, %c0_23, %c0_24], %45 {strides = array<i32>} : memref<8x128x32xbf16, #tpu.memory_space<vmem>>, vector<1x128x32xbf16>,
    %46 = vector.extract_strided_slice %2 {offsets = [0, 224], sizes = [128, 32], strides = [1, 1]} : vector<128x256xf32> to vector<128x32xf32>
    %47 = arith.truncf %46 : vector<128x32xf32> to vector<128x32xbf16>
    %c7 = arith.constant 7 : index
    %c0_25 = arith.constant 0 : index
    %c0_26 = arith.constant 0 : index
    %48 = vector.load %arg4[%c7, %c0_25, %c0_26] : memref<8x128x32xbf16, #tpu.memory_space<vmem>>, vector<1x128x32xbf16>
    %49 = vector.shape_cast %48 : vector<1x128x32xbf16> to vector<128x32xbf16>
    %50 = vector.shape_cast %47 : vector<128x32xbf16> to vector<1x128x32xbf16>
    tpu.vector_store %arg4[%c7, %c0_25, %c0_26], %50 {strides = array<i32>} : memref<8x128x32xbf16, #tpu.memory_space<vmem>>, vector<1x128x32xbf16>,
    return
  }
  func.func @transform_0(%arg0: i32) -> (i32, i32) {
    %c0_i32 = arith.constant 0 : i32
    %c0_i32_0 = arith.constant 0 : i32
    return %arg0, %c0_i32 : i32, i32
  }
  func.func @transform_1(%arg0: i32) -> (i32, i32) {
    %c0_i32 = arith.constant 0 : i32
    %c0_i32_0 = arith.constant 0 : i32
    %c0_i32_1 = arith.constant 0 : i32
    return %c0_i32, %c0_i32_0 : i32, i32
  }
  func.func @transform_2(%arg0: i32) -> (i32, i32) {
    %c0_i32 = arith.constant 0 : i32
    %c0_i32_0 = arith.constant 0 : i32
    %c0_i32_1 = arith.constant 0 : i32
    return %c0_i32, %c0_i32_0 : i32, i32
  }
  func.func @transform_3(%arg0: i32) -> (i32, i32, i32) {
    %c0_i32 = arith.constant 0 : i32
    %c0_i32_0 = arith.constant 0 : i32
    %c0_i32_1 = arith.constant 0 : i32
    return %c0_i32, %arg0, %c0_i32_0 : i32, i32, i32
  }
  func.func @transform_4(%arg0: i32) -> (i32, i32) {
    %c0_i32 = arith.constant 0 : i32
    %c0_i32_0 = arith.constant 0 : i32
    return %c0_i32, %arg0 : i32, i32
  }
  func.func @transform_5(%arg0: i32) -> (i32, i32) {
    %c0_i32 = arith.constant 0 : i32
    %c0_i32_0 = arith.constant 0 : i32
    return %arg0, %c0_i32 : i32, i32
  }
}

</mosaic_0001>

<llo_original>
// kernel: tpu_custom_call.1
$region0: #{tpu_custom_call.1}
  #allocation0 [shape = 'u32[]', space=smem, size = 0x4, offset = 0x4, fixed_abs, tag = 'smem constant byte address 0x4 - core index']
  #allocation1 [shape = 'u32[144,128]{1,0:T(1,128)}', space=vmem, size = 0x12000, scoped, tag = 'internal scratch']
  %s0 = inlined_call_operand.vmem [shape: bf16[256,16], index: 0, kind: input, shape index: {}]
  %s1 = inlined_call_operand.vmem [shape: bf16[16,256], index: 1, kind: input, shape index: {}]
  %s2 = inlined_call_operand.hbm [shape: f32[256,256], index: 2, kind: input, shape index: {}]
  %s3 = inlined_call_operand.vmem [shape: bf16[8,256,32], index: 3, kind: output, shape index: {0}]
  %s4 = inlined_call_operand.hbm [shape: f32[8,256], index: 4, kind: output, shape index: {1}]
  %s5 = inlined_call_operand.hbm [shape: f32[256,128], index: 5, kind: output, shape index: {2}]
  %6 = xla_tuple %s3, %s4, %s5
  %s7 = sld [smem:[#allocation0]]
  $region102: #{tpu_custom_call.1} parent=0
    _
  %s9 = ssub.s32 1, %s7
  %s10 = scalar_select 0, %s9, %s7
  $region1: #{tpu_custom_call.1} parent=0
    #allocation2 [shape = 'u8[262144]{0}', space=vmem, size = 0x40000, scoped, tag = 'input window, operand 2, single buffered']
    #allocation3 [shape = 's32[2]{0}', space=sflag, size = 0x8, scoped, tag = 'scoped memory for tpu_custom_call.1']
    #allocation4 [shape = 's32[2]{0}', space=sflag, size = 0x8, scoped, tag = 'scoped memory for tpu_custom_call.1']
    #allocation5 [shape = 'u8[524288]{0}', space=vmem, size = 0x80000, scoped, tag = 'output window, operand 0']
    #allocation6 [shape = 'u8[8192]{0}', space=vmem, size = 0x2000, scoped, tag = 'output window, operand 1']
    #allocation7 [shape = 'u8[131072]{0}', space=vmem, size = 0x20000, scoped, tag = 'output window, operand 2']
    #allocation8 [shape = 's32[2]{0}', space=sflag, size = 0x8, scoped, tag = 'scoped memory for tpu_custom_call.1']
    %11 = vsyncpa [#allocation3], 0
    %12 = vsyncpa [#allocation4], 0
    %s13 = scalar_lea.sflag [#allocation4], 1
    %14 = vsyncpa %s13, 0
    %15 = vsyncpa [#allocation8], 0
    %s16 = scalar_lea.sflag [#allocation8], 1
    %17 = vsyncpa %s16, 0
    loop: start=0, step=1, limit=4
    $region2: #{tpu_custom_call.1} parent=1 // loop_pre_header
      _
    $region3: #{tpu_custom_call.1} parent=1 // loop_header
      %s19 = sphi 0, %s23
      %p20 = scmp.ge.s32.totalorder %s19, 4
      %s29 = sphi 0, %s31
      %s32 = sphi 0, %s29
      %s33 = sphi 0, %s32
      %s49 = sphi 0, %s33
      %s53 = sphi 0, %s53
      %s55 = sphi 0, %s53
      %s56 = sphi 0, %s55
      %s70 = sphi 0, %s56
      %s74 = sphi 0, %s74
      %s76 = sphi 0, %s74
      %s77 = sphi 0, %s76
      %s91 = sphi 0, %s77
      %s97 = sphi 0, %s99
      %s100 = sphi 0, %s97
      %s101 = sphi 0, %s100
      %s117 = sphi 0, %s101
      %s123 = sphi 0, %s125
      %s126 = sphi 0, %s123
      %s127 = sphi 0, %s126
      %s143 = sphi 0, %s127
      %s149 = sphi 0, %s151
      %s152 = sphi 0, %s149
      %s153 = sphi 0, %s152
      %s169 = sphi 0, %s153
    $region4: #{tpu_custom_call.1} parent=1 // loop_header_branch
      %22 = sbr.rel (%p20) target = $region8
    $region5: #{tpu_custom_call.1} parent=1 // loop_body
      %s24 = ssub.s32 %s19, 1
      %s25 = ssub.s32 %s19, 2
      %s26 = sadd.s32 %s19, 1
      %s27 = ssub.s32 %s19, %s26
      %p28 = scmp.eq.s32.totalorder %s27, 0
      %s30 = sadd.s32 %s29, 1
      %s31 = scalar_select %p28, %s29, %s30
      %p34 = pneg %p28
      %p35 = scmp.eq.s32.totalorder %s19, 1
      %p36 = por %p34, %p35
      %p37 = scmp.ne.s32.totalorder %s29, %s32
      %p38 = scmp.eq.s32.totalorder %s19, 0
      %p39 = por %p37, %p38
      %p40 = scmp.ne.s32.totalorder %s29, %s32
      %p41 = scmp.eq.s32.totalorder %s24, 1
      %p42 = por %p40, %p41
      %p43 = scmp.ne.s32.totalorder %s32, %s33
      %p44 = scmp.eq.s32.totalorder %s24, 0
      %p45 = por %p43, %p44
      %p46 = scmp.ne.s32.totalorder %s32, %s33
      %p47 = scmp.eq.s32.totalorder %s25, 1
      %p48 = por %p46, %p47
      %p50 = scmp.ne.s32.totalorder %s33, %s49
      %p51 = scmp.eq.s32.totalorder %s25, 0
      %p52 = por %p50, %p51
      %s54 = sadd.s32 %s53, 1
      %p57 = scmp.eq.s32.totalorder %s19, 1
      %p58 = scmp.ne.s32.totalorder %s53, %s55
      %p59 = scmp.eq.s32.totalorder %s19, 0
      %p60 = por %p58, %p59
      %p61 = scmp.ne.s32.totalorder %s53, %s55
      %p62 = scmp.eq.s32.totalorder %s24, 1
      %p63 = por %p61, %p62
      %p64 = scmp.ne.s32.totalorder %s55, %s56
      %p65 = scmp.eq.s32.totalorder %s24, 0
      %p66 = por %p64, %p65
      %p67 = scmp.ne.s32.totalorder %s55, %s56
      %p68 = scmp.eq.s32.totalorder %s25, 1
      %p69 = por %p67, %p68
      %p71 = scmp.ne.s32.totalorder %s56, %s70
      %p72 = scmp.eq.s32.totalorder %s25, 0
      %p73 = por %p71, %p72
      %s75 = sadd.s32 %s74, 1
      %p78 = scmp.eq.s32.totalorder %s19, 1
      %p79 = scmp.ne.s32.totalorder %s74, %s76
      %p80 = scmp.eq.s32.totalorder %s19, 0
      %p81 = por %p79, %p80
      %p82 = scmp.ne.s32.totalorder %s74, %s76
      %p83 = scmp.eq.s32.totalorder %s24, 1
      %p84 = por %p82, %p83
      %p85 = scmp.ne.s32.totalorder %s76, %s77
      %p86 = scmp.eq.s32.totalorder %s24, 0
      %p87 = por %p85, %p86
      %p88 = scmp.ne.s32.totalorder %s76, %s77
      %p89 = scmp.eq.s32.totalorder %s25, 1
      %p90 = por %p88, %p89
      %p92 = scmp.ne.s32.totalorder %s77, %s91
      %p93 = scmp.eq.s32.totalorder %s25, 0
      %p94 = por %p92, %p93
      %s95 = ssub.s32 %s19, %s26
      %p96 = scmp.eq.s32.totalorder %s95, 0
      %s98 = sadd.s32 %s97, 1
      %s99 = scalar_select %p96, %s97, %s98
      %p102 = pneg %p96
      %p103 = scmp.eq.s32.totalorder %s19, 1
      %p104 = por %p102, %p103
      %p105 = scmp.ne.s32.totalorder %s97, %s100
      %p106 = scmp.eq.s32.totalorder %s19, 0
      %p107 = por %p105, %p106
      %p108 = scmp.ne.s32.totalorder %s97, %s100
      %p109 = scmp.eq.s32.totalorder %s24, 1
      %p110 = por %p108, %p109
      %p111 = scmp.ne.s32.totalorder %s100, %s101
      %p112 = scmp.eq.s32.totalorder %s24, 0
      %p113 = por %p111, %p112
      %p114 = scmp.ne.s32.totalorder %s100, %s101
      %p115 = scmp.eq.s32.totalorder %s25, 1
      %p116 = por %p114, %p115
      %p118 = scmp.ne.s32.totalorder %s101, %s117
      %p119 = scmp.eq.s32.totalorder %s25, 0
      %p120 = por %p118, %p119
      %s121 = ssub.s32 %s19, %s26
      %p122 = scmp.eq.s32.totalorder %s121, 0
      %s124 = sadd.s32 %s123, 1
      %s125 = scalar_select %p122, %s123, %s124
      %p128 = pneg %p122
      %p129 = scmp.eq.s32.totalorder %s19, 1
      %p130 = por %p128, %p129
      %p131 = scmp.ne.s32.totalorder %s123, %s126
      %p132 = scmp.eq.s32.totalorder %s19, 0
      %p133 = por %p131, %p132
      %p134 = scmp.ne.s32.totalorder %s123, %s126
      %p135 = scmp.eq.s32.totalorder %s24, 1
      %p136 = por %p134, %p135
      %p137 = scmp.ne.s32.totalorder %s126, %s127
      %p138 = scmp.eq.s32.totalorder %s24, 0
      %p139 = por %p137, %p138
      %p140 = scmp.ne.s32.totalorder %s126, %s127
      %p141 = scmp.eq.s32.totalorder %s25, 1
      %p142 = por %p140, %p141
      %p144 = scmp.ne.s32.totalorder %s127, %s143
      %p145 = scmp.eq.s32.totalorder %s25, 0
      %p146 = por %p144, %p145
      %s147 = ssub.s32 %s19, %s26
      %p148 = scmp.eq.s32.totalorder %s147, 0
      %s150 = sadd.s32 %s149, 1
      %s151 = scalar_select %p148, %s149, %s150
      %p154 = pneg %p148
      %p155 = scmp.eq.s32.totalorder %s19, 1
      %p156 = por %p154, %p155
      %p157 = scmp.ne.s32.totalorder %s149, %s152
      %p158 = scmp.eq.s32.totalorder %s19, 0
      %p159 = por %p157, %p158
      %p160 = scmp.ne.s32.totalorder %s149, %s152
      %p161 = scmp.eq.s32.totalorder %s24, 1
      %p162 = por %p160, %p161
      %p163 = scmp.ne.s32.totalorder %s152, %s153
      %p164 = scmp.eq.s32.totalorder %s24, 0
      %p165 = por %p163, %p164
      %p166 = scmp.ne.s32.totalorder %s152, %s153
      %p167 = scmp.eq.s32.totalorder %s25, 1
      %p168 = por %p166, %p167
      %p170 = scmp.ne.s32.totalorder %s153, %s169
      %p171 = scmp.eq.s32.totalorder %s25, 0
      %p172 = por %p170, %p171
      %p173 = scmp.le.s32.totalorder 1, %s19
      %p174 = scmp.lt.s32.totalorder %s19, 3
      %p175 = pnand %p173, %p174
      %p176 = pneg %p175
      // Predicated region
      $region9: #{tpu_custom_call.1} parent=5 // pred_check
        _
      $region10: #{tpu_custom_call.1} parent=5 // pred_check_branch
        %178 = sbr.rel (%p175) target = $region12
      $region11: #{tpu_custom_call.1} parent=5 // pred_region
        %s179 = ssub.s32 %s19, 1
        // Predicated region
        $region13: #{tpu_custom_call.1} parent=11 // pred_check
          %p180 = pneg %p66
        $region14: #{tpu_custom_call.1} parent=11 // pred_check_branch
          %182 = sbr.rel (%p180) target = $region16
        $region15: #{tpu_custom_call.1} parent=11 // pred_region
          _
        $region16: #{tpu_custom_call.1} parent=11 // pred_fallthru
          _
        // Predicated region
        $region17: #{tpu_custom_call.1} parent=11 // pred_check
          %p183 = pneg %p87
        $region18: #{tpu_custom_call.1} parent=11 // pred_check_branch
          %185 = sbr.rel (%p183) target = $region20
        $region19: #{tpu_custom_call.1} parent=11 // pred_region
          %s187 = ssub.s32 8192, 8192
          %188 = vsyncadd [#allocation3], %s187
          %s189 = sshll.u32 [#allocation2], 4
          %s190 = int_to_ptr.vmem [resolvable:$true] %s189
          %195 = dma.hbm_to_vmem [thread:$0]  %s2, 8192, %s190, [#allocation3], 256, 256, 16
        $region20: #{tpu_custom_call.1} parent=11 // pred_fallthru
          _
      $region12: #{tpu_custom_call.1} parent=5 // pred_fallthru
        _
      %p196 = scmp.lt.s32.totalorder %s19, 2
      // Predicated region
      $region21: #{tpu_custom_call.1} parent=5 // pred_check
        %p197 = pneg %p196
      $region22: #{tpu_custom_call.1} parent=5 // pred_check_branch
        %199 = sbr.rel (%p197) target = $region24
      $region23: #{tpu_custom_call.1} parent=5 // pred_region
        // Predicated region
        $region25: #{tpu_custom_call.1} parent=23 // pred_check
          %p200 = pneg %p39
        $region26: #{tpu_custom_call.1} parent=23 // pred_check_branch
          %202 = sbr.rel (%p200) target = $region28
        $region27: #{tpu_custom_call.1} parent=23 // pred_region
          %s203 = smul.u32 16, %s19
          %p204 = scmp.lt.s32.totalorder %s203, 31
          %s205 = scalar_select %p204, %s203, 31
          %s206 = smul.addr %s205, 4
          %s207 = scalar_lea.vmem %s0, %s206
          %s208 = smul.u32 16, %s19
        $region28: #{tpu_custom_call.1} parent=23 // pred_fallthru
          _
      $region24: #{tpu_custom_call.1} parent=5 // pred_fallthru
        _
      %p209 = scmp.le.s32.totalorder 1, %s19
      %p210 = scmp.lt.s32.totalorder %s19, 3
      %p211 = pnand %p209, %p210
      %p212 = pneg %p211
      // Predicated region
      $region29: #{tpu_custom_call.1} parent=5 // pred_check
        _
      $region30: #{tpu_custom_call.1} parent=5 // pred_check_branch
        %214 = sbr.rel (%p211) target = $region32
      $region31: #{tpu_custom_call.1} parent=5 // pred_region
        %s215 = ssub.s32 %s19, 1
        // Predicated region
        $region33: #{tpu_custom_call.1} parent=31 // pred_check
          %p216 = pneg %p87
        $region34: #{tpu_custom_call.1} parent=31 // pred_check_branch
          %218 = sbr.rel (%p216) target = $region36
        $region35: #{tpu_custom_call.1} parent=31 // pred_region
          %219 = dma.done [#allocation3], 8192
        $region36: #{tpu_custom_call.1} parent=31 // pred_fallthru
          _
        %s220 = smul.u32 16, %s24
        %p221 = scmp.lt.s32.totalorder %s220, 31
        %s222 = scalar_select %p221, %s220, 31
        %s223 = smul.addr %s222, 4
        %s224 = scalar_lea.vmem %s0, %s223
        %p225 = pneg %p45
        %p226 = pneg %p42
        %p227 = pneg %p66
        %p228 = pneg %p63
        %p229 = pneg %p87
        %p230 = pneg %p84
        %p231 = pneg %p113
        %p232 = pneg %p110
        %s233 = sand.u32 %s100, 1
        %s234 = sand.u32 %s100, 1
        %s235 = smul.addr %s234, 512
        %s236 = scalar_lea.vmem [#allocation5], %s235
        %p237 = pneg %p139
        %p238 = pneg %p136
        %s239 = sand.u32 %s126, 1
        %s240 = scalar_lea.sflag [#allocation4], %s239
        %s241 = sand.u32 %s126, 1
        %s242 = smul.addr %s241, 8
        %s243 = scalar_lea.vmem [#allocation6], %s242
        %p244 = pneg %p165
        %p245 = pneg %p162
        %s246 = sand.u32 %s152, 1
        %s247 = scalar_lea.sflag [#allocation8], %s246
        %s248 = sand.u32 %s152, 1
        %s249 = smul.addr %s248, 128
        %s250 = scalar_lea.vmem [#allocation7], %s249
        %s251 = smul.u32 16, %s24
        %p252 = scmp.lt.s32.totalorder %s251, 31
        %s253 = scalar_select %p252, %s251, 31
        %s254 = smul.addr %s253, 4
        %s255 = scalar_lea.vmem %s0, %s254
        %s256 = smul.u32 16, %s24
        %s257 = smul.u32 16, %s24
        %s258 = smul.u32 16, %s24
        %v260 = vld [vmem:[%s255] sm:$0xf]
        %v261 = vld [vmem:[%s255 + $0x4] sm:$0xf]
        %v262 = vld [vmem:[%s255 + $0x8] sm:$0xf]
        %v263 = vld [vmem:[%s255 + $0xc] sm:$0xf]
        %v264 = vld [vmem:[%s255 + $0x10] sm:$0xf]
        %v265 = vld [vmem:[%s255 + $0x14] sm:$0xf]
        %v266 = vld [vmem:[%s255 + $0x18] sm:$0xf]
        %v267 = vld [vmem:[%s255 + $0x1c] sm:$0xf]
        %v268 = vld [vmem:[%s255 + $0x20] sm:$0xf]
        %v269 = vld [vmem:[%s255 + $0x24] sm:$0xf]
        %v270 = vld [vmem:[%s255 + $0x28] sm:$0xf]
        %v271 = vld [vmem:[%s255 + $0x2c] sm:$0xf]
        %v272 = vld [vmem:[%s255 + $0x30] sm:$0xf]
        %v273 = vld [vmem:[%s255 + $0x34] sm:$0xf]
        %v274 = vld [vmem:[%s255 + $0x38] sm:$0xf]
        %v275 = vld [vmem:[%s255 + $0x3c] sm:$0xf]
        %v276 = vld [vmem:[%s1] sm:$0xff]
        %v277 = vld [vmem:[%s1 + $0x8] sm:$0xff]
        %v294 = vunpack.c.l.b16 %v260
        %v295 = vunpack.c.l.b16 %v261
        %v296 = vunpack.c.l.b16 %v262
        %v297 = vunpack.c.l.b16 %v263
        %v298 = vunpack.c.l.b16 %v264
        %v299 = vunpack.c.l.b16 %v265
        %v300 = vunpack.c.l.b16 %v266
        %v301 = vunpack.c.l.b16 %v267
        %v302 = vunpack.c.l.b16 %v268
        %v303 = vunpack.c.l.b16 %v269
        %v304 = vunpack.c.l.b16 %v270
        %v305 = vunpack.c.l.b16 %v271
        %v306 = vunpack.c.l.b16 %v272
        %v307 = vunpack.c.l.b16 %v273
        %v308 = vunpack.c.l.b16 %v274
        %v309 = vunpack.c.l.b16 %v275
        %v310 = vpack.c.b16 %v295, %v294
        %v311 = vpack.c.b16 %v297, %v296
        %v312 = vpack.c.b16 %v299, %v298
        %v313 = vpack.c.b16 %v301, %v300
        %v314 = vpack.c.b16 %v303, %v302
        %v315 = vpack.c.b16 %v305, %v304
        %v316 = vpack.c.b16 %v307, %v306
        %v317 = vpack.c.b16 %v309, %v308
        %v320 = vunpack.c.l.b16 %v276
        %v321 = vunpack.c.h.b16 %v276
        %v322 = vunpack.c.l.b16 %v277
        %v323 = vunpack.c.h.b16 %v277
        %v324 = vpack.c.b16 %v322, %v320
        %v325 = vpack.c.b16 %v323, %v321
        %vm328 = vcmask 130048
        %v330 = vsel %vm328, %v310, 0
        %v333 = vsel %vm328, %v311, 0
        %v336 = vsel %vm328, %v312, 0
        %v339 = vsel %vm328, %v313, 0
        %v342 = vsel %vm328, %v314, 0
        %v345 = vsel %vm328, %v315, 0
        %v348 = vsel %vm328, %v316, 0
        %v351 = vsel %vm328, %v317, 0
        %353 = vmatprep.subr.bf16.mxu0 0
        %354 = vmatpush1.bf16.msra.mxu0 0
        %355 = vmatprep.subr.bf16.mxu0 0
        %356 = vmatpush1.bf16.msra.mxu0 0
        %357 = vmatprep.subr.bf16.mxu0 0
        %358 = vmatpush1.bf16.msra.mxu0 0
        %359 = vmatprep.subr.bf16.mxu0 0
        %360 = vmatpush1.bf16.msra.mxu0 0
        %361 = vmatprep.subr.bf16.mxu0 0
        %362 = vmatpush1.bf16.msra.mxu0 0
        %363 = vmatprep.subr.bf16.mxu0 0
        %364 = vmatpush1.bf16.msra.mxu0 0
        %365 = vmatprep.subr.bf16.mxu0 0
        %366 = vmatpush1.bf16.msra.mxu0 0
        %367 = vmatprep.subr.bf16.mxu0 %v325
        %368 = vmatpush1.bf16.msra.mxu0 %v324
        %369 = vmatprep.subr.bf16.mxu0 0
        %370 = vmatpush2.bf16.msra.mxu0 0
        %371 = vmatprep.subr.bf16.mxu0 0
        %372 = vmatpush2.bf16.msra.mxu0 0
        %373 = vmatprep.subr.bf16.mxu0 0
        %374 = vmatpush2.bf16.msra.mxu0 0
        %375 = vmatprep.subr.bf16.mxu0 0
        %376 = vmatpush2.bf16.msra.mxu0 0
        %377 = vmatprep.subr.bf16.mxu0 0
        %378 = vmatpush2.bf16.msra.mxu0 0
        %379 = vmatprep.subr.bf16.mxu0 0
        %380 = vmatpush2.bf16.msra.mxu0 0
        %381 = vmatprep.subr.bf16.mxu0 0
        %382 = vmatpush2.bf16.msra.mxu0 0
        %383 = vmatprep.subr.bf16.mxu0 0
        %384 = vmatpush2.bf16.msra.mxu0 0
        %385 = vmatprep.mubr.bf16.mxu0 0
        %386 = vmatmul.mubr.bf16.gmra.mxu0 %v330
        %v387 = vpop.f32.mrf.mxu0
        %v388 = vadd.f32 0.0, %v387
        %v389 = vpop.f32.mrf.mxu0
        %v390 = vadd.f32 0.0, %v389
        %v391 = vpop.f32.mrf.mxu0
        %v392 = vadd.f32 0.0, %v391
        %v393 = vpop.f32.mrf.mxu0
        %v394 = vadd.f32 0.0, %v393
        %395 = vmatprep.mubr.bf16.mxu0 0
        %396 = vmatmul.mubr.bf16.gmra.mxu0 %v333
        %v397 = vpop.f32.mrf.mxu0
        %v398 = vadd.f32 0.0, %v397
        %v399 = vpop.f32.mrf.mxu0
        %v400 = vadd.f32 0.0, %v399
        %v401 = vpop.f32.mrf.mxu0
        %v402 = vadd.f32 0.0, %v401
        %v403 = vpop.f32.mrf.mxu0
        %v404 = vadd.f32 0.0, %v403
        %405 = vmatprep.mubr.bf16.mxu0 0
        %406 = vmatmul.mubr.bf16.gmra.mxu0 %v336
        %v407 = vpop.f32.mrf.mxu0
        %v408 = vadd.f32 0.0, %v407
        %v409 = vpop.f32.mrf.mxu0
        %v410 = vadd.f32 0.0, %v409
        %v411 = vpop.f32.mrf.mxu0
        %v412 = vadd.f32 0.0, %v411
        %v413 = vpop.f32.mrf.mxu0
        %v414 = vadd.f32 0.0, %v413
        %415 = vmatprep.mubr.bf16.mxu0 0
        %416 = vmatmul.mubr.bf16.gmra.mxu0 %v339
        %v417 = vpop.f32.mrf.mxu0
        %v418 = vadd.f32 0.0, %v417
        %v419 = vpop.f32.mrf.mxu0
        %v420 = vadd.f32 0.0, %v419
        %v421 = vpop.f32.mrf.mxu0
        %v422 = vadd.f32 0.0, %v421
        %v423 = vpop.f32.mrf.mxu0
        %v424 = vadd.f32 0.0, %v423
        %425 = vmatprep.mubr.bf16.mxu0 0
        %426 = vmatmul.mubr.bf16.gmra.mxu0 %v342
        %v427 = vpop.f32.mrf.mxu0
        %v428 = vadd.f32 0.0, %v427
        %v429 = vpop.f32.mrf.mxu0
        %v430 = vadd.f32 0.0, %v429
        %v431 = vpop.f32.mrf.mxu0
        %v432 = vadd.f32 0.0, %v431
        %v433 = vpop.f32.mrf.mxu0
        %v434 = vadd.f32 0.0, %v433
        %435 = vmatprep.mubr.bf16.mxu0 0
        %436 = vmatmul.mubr.bf16.gmra.mxu0 %v345
        %v437 = vpop.f32.mrf.mxu0
        %v438 = vadd.f32 0.0, %v437
        %v439 = vpop.f32.mrf.mxu0
        %v440 = vadd.f32 0.0, %v439
        %v441 = vpop.f32.mrf.mxu0
        %v442 = vadd.f32 0.0, %v441
        %v443 = vpop.f32.mrf.mxu0
        %v444 = vadd.f32 0.0, %v443
        %445 = vmatprep.mubr.bf16.mxu0 0
        %446 = vmatmul.mubr.bf16.gmra.mxu0 %v348
        %v447 = vpop.f32.mrf.mxu0
        %v448 = vadd.f32 0.0, %v447
        %v449 = vpop.f32.mrf.mxu0
        %v450 = vadd.f32 0.0, %v449
        %v451 = vpop.f32.mrf.mxu0
        %v452 = vadd.f32 0.0, %v451
        %v453 = vpop.f32.mrf.mxu0
        %v454 = vadd.f32 0.0, %v453
        %455 = vmatprep.mubr.bf16.mxu0 0
        %456 = vmatmul.mubr.bf16.gmra.mxu0 %v351
        %v457 = vpop.f32.mrf.mxu0
        %v458 = vadd.f32 0.0, %v457
        %v459 = vpop.f32.mrf.mxu0
        %v460 = vadd.f32 0.0, %v459
        %v461 = vpop.f32.mrf.mxu0
        %v462 = vadd.f32 0.0, %v461
        %v463 = vpop.f32.mrf.mxu0
        %v464 = vadd.f32 0.0, %v463
        %465 = vdwg.mxu0
        %v466 = vld [vmem:[#allocation2] sm:$0xff]
        %v467 = vld [vmem:[#allocation2 + $0x8] sm:$0xff]
        %v468 = vld [vmem:[#allocation2 + $0x10] sm:$0xff]
        %v469 = vld [vmem:[#allocation2 + $0x18] sm:$0xff]
        %v470 = vld [vmem:[#allocation2 + $0x20] sm:$0xff]
        %v471 = vld [vmem:[#allocation2 + $0x28] sm:$0xff]
        %v472 = vld [vmem:[#allocation2 + $0x30] sm:$0xff]
        %v473 = vld [vmem:[#allocation2 + $0x38] sm:$0xff]
        %v474 = vld [vmem:[#allocation2 + $0x40] sm:$0xff]
        %v475 = vld [vmem:[#allocation2 + $0x48] sm:$0xff]
        %v476 = vld [vmem:[#allocation2 + $0x50] sm:$0xff]
        %v477 = vld [vmem:[#allocation2 + $0x58] sm:$0xff]
        %v478 = vld [vmem:[#allocation2 + $0x60] sm:$0xff]
        %v479 = vld [vmem:[#allocation2 + $0x68] sm:$0xff]
        %v480 = vld [vmem:[#allocation2 + $0x70] sm:$0xff]
        %v481 = vld [vmem:[#allocation2 + $0x78] sm:$0xff]
        %v482 = vld [vmem:[#allocation2 + $0x80] sm:$0xff]
        %v483 = vld [vmem:[#allocation2 + $0x88] sm:$0xff]
        %v484 = vld [vmem:[#allocation2 + $0x90] sm:$0xff]
        %v485 = vld [vmem:[#allocation2 + $0x98] sm:$0xff]
        %v486 = vld [vmem:[#allocation2 + $0xa0] sm:$0xff]
        %v487 = vld [vmem:[#allocation2 + $0xa8] sm:$0xff]
        %v488 = vld [vmem:[#allocation2 + $0xb0] sm:$0xff]
        %v489 = vld [vmem:[#allocation2 + $0xb8] sm:$0xff]
        %v490 = vld [vmem:[#allocation2 + $0xc0] sm:$0xff]
        %v491 = vld [vmem:[#allocation2 + $0xc8] sm:$0xff]
        %v492 = vld [vmem:[#allocation2 + $0xd0] sm:$0xff]
        %v493 = vld [vmem:[#allocation2 + $0xd8] sm:$0xff]
        %v494 = vld [vmem:[#allocation2 + $0xe0] sm:$0xff]
        %v495 = vld [vmem:[#allocation2 + $0xe8] sm:$0xff]
        %v496 = vld [vmem:[#allocation2 + $0xf0] sm:$0xff]
        %v497 = vld [vmem:[#allocation2 + $0xf8] sm:$0xff]
        %v498 = vld [vmem:[#allocation2 + $0x100] sm:$0xff]
        %v499 = vld [vmem:[#allocation2 + $0x108] sm:$0xff]
        %v500 = vld [vmem:[#allocation2 + $0x110] sm:$0xff]
        %v501 = vld [vmem:[#allocation2 + $0x118] sm:$0xff]
        %v502 = vld [vmem:[#allocation2 + $0x120] sm:$0xff]
        %v503 = vld [vmem:[#allocation2 + $0x128] sm:$0xff]
        %v504 = vld [vmem:[#allocation2 + $0x130] sm:$0xff]
        %v505 = vld [vmem:[#allocation2 + $0x138] sm:$0xff]
        %v506 = vld [vmem:[#allocation2 + $0x140] sm:$0xff]
        %v507 = vld [vmem:[#allocation2 + $0x148] sm:$0xff]
        %v508 = vld [vmem:[#allocation2 + $0x150] sm:$0xff]
        %v509 = vld [vmem:[#allocation2 + $0x158] sm:$0xff]
        %v510 = vld [vmem:[#allocation2 + $0x160] sm:$0xff]
        %v511 = vld [vmem:[#allocation2 + $0x168] sm:$0xff]
        %v512 = vld [vmem:[#allocation2 + $0x170] sm:$0xff]
        %v513 = vld [vmem:[#allocation2 + $0x178] sm:$0xff]
        %v514 = vld [vmem:[#allocation2 + $0x180] sm:$0xff]
        %v515 = vld [vmem:[#allocation2 + $0x188] sm:$0xff]
        %v516 = vld [vmem:[#allocation2 + $0x190] sm:$0xff]
        %v517 = vld [vmem:[#allocation2 + $0x198] sm:$0xff]
        %v518 = vld [vmem:[#allocation2 + $0x1a0] sm:$0xff]
        %v519 = vld [vmem:[#allocation2 + $0x1a8] sm:$0xff]
        %v520 = vld [vmem:[#allocation2 + $0x1b0] sm:$0xff]
        %v521 = vld [vmem:[#allocation2 + $0x1b8] sm:$0xff]
        %v522 = vld [vmem:[#allocation2 + $0x1c0] sm:$0xff]
        %v523 = vld [vmem:[#allocation2 + $0x1c8] sm:$0xff]
        %v524 = vld [vmem:[#allocation2 + $0x1d0] sm:$0xff]
        %v525 = vld [vmem:[#allocation2 + $0x1d8] sm:$0xff]
        %v526 = vld [vmem:[#allocation2 + $0x1e0] sm:$0xff]
        %v527 = vld [vmem:[#allocation2 + $0x1e8] sm:$0xff]
        %v528 = vld [vmem:[#allocation2 + $0x1f0] sm:$0xff]
        %v529 = vld [vmem:[#allocation2 + $0x1f8] sm:$0xff]
        %530 = vmatprep.subr.mxu0 %v497
        %531 = vmatpush1.msra.mxu0 %v496
        %532 = vmatprep.subr.mxu0 %v495
        %533 = vmatpush1.msra.mxu0 %v494
        %534 = vmatprep.subr.mxu0 %v493
        %535 = vmatpush1.msra.mxu0 %v492
        %536 = vmatprep.subr.mxu0 %v491
        %537 = vmatpush1.msra.mxu0 %v490
        %538 = vmatprep.subr.mxu0 %v489
        %539 = vmatpush1.msra.mxu0 %v488
        %540 = vmatprep.subr.mxu0 %v487
        %541 = vmatpush1.msra.mxu0 %v486
        %542 = vmatprep.subr.mxu0 %v485
        %543 = vmatpush1.msra.mxu0 %v484
        %544 = vmatprep.subr.mxu0 %v483
        %545 = vmatpush1.msra.mxu0 %v482
        %546 = vmatprep.subr.mxu0 %v481
        %547 = vmatpush1.msra.mxu0 %v480
        %548 = vmatprep.subr.mxu0 %v479
        %549 = vmatpush1.msra.mxu0 %v478
        %550 = vmatprep.subr.mxu0 %v477
        %551 = vmatpush1.msra.mxu0 %v476
        %552 = vmatprep.subr.mxu0 %v475
        %553 = vmatpush1.msra.mxu0 %v474
        %554 = vmatprep.subr.mxu0 %v473
        %555 = vmatpush1.msra.mxu0 %v472
        %556 = vmatprep.subr.mxu0 %v471
        %557 = vmatpush1.msra.mxu0 %v470
        %558 = vmatprep.subr.mxu0 %v469
        %559 = vmatpush1.msra.mxu0 %v468
        %560 = vmatprep.subr.mxu0 %v467
        %561 = vmatpush1.msra.mxu0 %v466
        %562 = vmatprep.subr.mxu0 %v529
        %563 = vmatpush2.msra.mxu0 %v528
        %564 = vmatprep.subr.mxu0 %v527
        %565 = vmatpush2.msra.mxu0 %v526
        %566 = vmatprep.subr.mxu0 %v525
        %567 = vmatpush2.msra.mxu0 %v524
        %568 = vmatprep.subr.mxu0 %v523
        %569 = vmatpush2.msra.mxu0 %v522
        %570 = vmatprep.subr.mxu0 %v521
        %571 = vmatpush2.msra.mxu0 %v520
        %572 = vmatprep.subr.mxu0 %v519
        %573 = vmatpush2.msra.mxu0 %v518
        %574 = vmatprep.subr.mxu0 %v517
        %575 = vmatpush2.msra.mxu0 %v516
        %576 = vmatprep.subr.mxu0 %v515
        %577 = vmatpush2.msra.mxu0 %v514
        %578 = vmatprep.subr.mxu0 %v513
        %579 = vmatpush2.msra.mxu0 %v512
        %580 = vmatprep.subr.mxu0 %v511
        %581 = vmatpush2.msra.mxu0 %v510
        %582 = vmatprep.subr.mxu0 %v509
        %583 = vmatpush2.msra.mxu0 %v508
        %584 = vmatprep.subr.mxu0 %v507
        %585 = vmatpush2.msra.mxu0 %v506
        %586 = vmatprep.subr.mxu0 %v505
        %587 = vmatpush2.msra.mxu0 %v504
        %588 = vmatprep.subr.mxu0 %v503
        %589 = vmatpush2.msra.mxu0 %v502
        %590 = vmatprep.subr.mxu0 %v501
        %591 = vmatpush2.msra.mxu0 %v500
        %592 = vmatprep.subr.mxu0 %v499
        %593 = vmatpush2.msra.mxu0 %v498
        %594 = vmatprep.mubr.f32.mxu0 %v390
        %595 = vmatmul.mubr.f32.gmra.mxu0 %v388
        %v596 = vpop.f32.mrf.mxu0
        %v597 = vadd.f32 0.0, %v596
        %v598 = vpop.f32.mrf.mxu0
        %v599 = vadd.f32 0.0, %v598
        %600 = vmatprep.mubr.f32.mxu0 %v394
        %601 = vmatmul.mubr.f32.gmra.mxu0 %v392
        %v602 = vpop.f32.mrf.mxu0
        %v603 = vadd.f32 0.0, %v602
        %v604 = vpop.f32.mrf.mxu0
        %v605 = vadd.f32 0.0, %v604
        %606 = vmatprep.mubr.f32.mxu0 %v400
        %607 = vmatmul.mubr.f32.gmra.mxu0 %v398
        %v608 = vpop.f32.mrf.mxu0
        %v609 = vadd.f32 0.0, %v608
        %v610 = vpop.f32.mrf.mxu0
        %v611 = vadd.f32 0.0, %v610
        %612 = vmatprep.mubr.f32.mxu0 %v404
        %613 = vmatmul.mubr.f32.gmra.mxu0 %v402
        %v614 = vpop.f32.mrf.mxu0
        %v615 = vadd.f32 0.0, %v614
        %v616 = vpop.f32.mrf.mxu0
        %v617 = vadd.f32 0.0, %v616
        %618 = vmatprep.mubr.f32.mxu0 %v410
        %619 = vmatmul.mubr.f32.gmra.mxu0 %v408
        %v620 = vpop.f32.mrf.mxu0
        %v621 = vadd.f32 0.0, %v620
        %v622 = vpop.f32.mrf.mxu0
        %v623 = vadd.f32 0.0, %v622
        %624 = vmatprep.mubr.f32.mxu0 %v414
        %625 = vmatmul.mubr.f32.gmra.mxu0 %v412
        %v626 = vpop.f32.mrf.mxu0
        %v627 = vadd.f32 0.0, %v626
        %v628 = vpop.f32.mrf.mxu0
        %v629 = vadd.f32 0.0, %v628
        %630 = vmatprep.mubr.f32.mxu0 %v420
        %631 = vmatmul.mubr.f32.gmra.mxu0 %v418
        %v632 = vpop.f32.mrf.mxu0
        %v633 = vadd.f32 0.0, %v632
        %v634 = vpop.f32.mrf.mxu0
        %v635 = vadd.f32 0.0, %v634
        %636 = vmatprep.mubr.f32.mxu0 %v424
        %637 = vmatmul.mubr.f32.gmra.mxu0 %v422
        %v638 = vpop.f32.mrf.mxu0
        %v639 = vadd.f32 0.0, %v638
        %v640 = vpop.f32.mrf.mxu0
        %v641 = vadd.f32 0.0, %v640
        %642 = vmatprep.mubr.f32.mxu0 %v430
        %643 = vmatmul.mubr.f32.gmra.mxu0 %v428
        %v644 = vpop.f32.mrf.mxu0
        %v645 = vadd.f32 0.0, %v644
        %v646 = vpop.f32.mrf.mxu0
        %v647 = vadd.f32 0.0, %v646
        %648 = vmatprep.mubr.f32.mxu0 %v434
        %649 = vmatmul.mubr.f32.gmra.mxu0 %v432
        %v650 = vpop.f32.mrf.mxu0
        %v651 = vadd.f32 0.0, %v650
        %v652 = vpop.f32.mrf.mxu0
        %v653 = vadd.f32 0.0, %v652
        %654 = vmatprep.mubr.f32.mxu0 %v440
        %655 = vmatmul.mubr.f32.gmra.mxu0 %v438
        %v656 = vpop.f32.mrf.mxu0
        %v657 = vadd.f32 0.0, %v656
        %v658 = vpop.f32.mrf.mxu0
        %v659 = vadd.f32 0.0, %v658
        %660 = vmatprep.mubr.f32.mxu0 %v444
        %661 = vmatmul.mubr.f32.gmra.mxu0 %v442
        %v662 = vpop.f32.mrf.mxu0
        %v663 = vadd.f32 0.0, %v662
        %v664 = vpop.f32.mrf.mxu0
        %v665 = vadd.f32 0.0, %v664
        %666 = vmatprep.mubr.f32.mxu0 %v450
        %667 = vmatmul.mubr.f32.gmra.mxu0 %v448
        %v668 = vpop.f32.mrf.mxu0
        %v669 = vadd.f32 0.0, %v668
        %v670 = vpop.f32.mrf.mxu0
        %v671 = vadd.f32 0.0, %v670
        %672 = vmatprep.mubr.f32.mxu0 %v454
        %673 = vmatmul.mubr.f32.gmra.mxu0 %v452
        %v674 = vpop.f32.mrf.mxu0
        %v675 = vadd.f32 0.0, %v674
        %v676 = vpop.f32.mrf.mxu0
        %v677 = vadd.f32 0.0, %v676
        %678 = vmatprep.mubr.f32.mxu0 %v460
        %679 = vmatmul.mubr.f32.gmra.mxu0 %v458
        %v680 = vpop.f32.mrf.mxu0
        %v681 = vadd.f32 0.0, %v680
        %v682 = vpop.f32.mrf.mxu0
        %v683 = vadd.f32 0.0, %v682
        %684 = vmatprep.mubr.f32.mxu0 %v464
        %685 = vmatmul.mubr.f32.gmra.mxu0 %v462
        %v686 = vpop.f32.mrf.mxu0
        %v687 = vadd.f32 0.0, %v686
        %v688 = vpop.f32.mrf.mxu0
        %v689 = vadd.f32 0.0, %v688
        %690 = vdwg.mxu0
        %691 = vxpose.xlu0.b32.start [1/16] %v597, 128
        %692 = vxpose.xlu0.b32.cont [2/16] %v603, 128
        %693 = vxpose.xlu0.b32.cont [3/16] %v609, 128
        %694 = vxpose.xlu0.b32.cont [4/16] %v615, 128
        %695 = vxpose.xlu0.b32.cont [5/16] %v621, 128
        %696 = vxpose.xlu0.b32.cont [6/16] %v627, 128
        %697 = vxpose.xlu0.b32.cont [7/16] %v633, 128
        %698 = vxpose.xlu0.b32.cont [8/16] %v639, 128
        %699 = vxpose.xlu0.b32.cont [9/16] %v645, 128
        %700 = vxpose.xlu0.b32.cont [10/16] %v651, 128
        %701 = vxpose.xlu0.b32.cont [11/16] %v657, 128
        %702 = vxpose.xlu0.b32.cont [12/16] %v663, 128
        %703 = vxpose.xlu0.b32.cont [13/16] %v669, 128
        %704 = vxpose.xlu0.b32.cont [14/16] %v675, 128
        %705 = vxpose.xlu0.b32.cont [15/16] %v681, 128
        %706 = vxpose.xlu0.b32.end [16/16] %v687, 128
        %v707 = vpop.trf.xlu0
        %v708 = vpop.trf.xlu0
        %v709 = vpop.trf.xlu0
        %v710 = vpop.trf.xlu0
        %v711 = vpop.trf.xlu0
        %v712 = vpop.trf.xlu0
        %v713 = vpop.trf.xlu0
        %v714 = vpop.trf.xlu0
        %v715 = vpop.trf.xlu0
        %v716 = vpop.trf.xlu0
        %v717 = vpop.trf.xlu0
        %v718 = vpop.trf.xlu0
        %v719 = vpop.trf.xlu0
        %v720 = vpop.trf.xlu0
        %v721 = vpop.trf.xlu0
        %v722 = vpop.trf.xlu0
        %723 = vst [vmem:[%s243] sm:$0xff] %v707
        %724 = vst [vmem:[%s250] sm:$0xff] %v599
        %725 = vst [vmem:[%s250 + $0x8] sm:$0xff] %v605
        %726 = vst [vmem:[%s250 + $0x10] sm:$0xff] %v611
        %727 = vst [vmem:[%s250 + $0x18] sm:$0xff] %v617
        %728 = vst [vmem:[%s250 + $0x20] sm:$0xff] %v623
        %729 = vst [vmem:[%s250 + $0x28] sm:$0xff] %v629
        %730 = vst [vmem:[%s250 + $0x30] sm:$0xff] %v635
        %731 = vst [vmem:[%s250 + $0x38] sm:$0xff] %v641
        %732 = vst [vmem:[%s250 + $0x40] sm:$0xff] %v647
        %733 = vst [vmem:[%s250 + $0x48] sm:$0xff] %v653
        %734 = vst [vmem:[%s250 + $0x50] sm:$0xff] %v659
        %735 = vst [vmem:[%s250 + $0x58] sm:$0xff] %v665
        %736 = vst [vmem:[%s250 + $0x60] sm:$0xff] %v671
        %737 = vst [vmem:[%s250 + $0x68] sm:$0xff] %v677
        %738 = vst [vmem:[%s250 + $0x70] sm:$0xff] %v683
        %739 = vst [vmem:[%s250 + $0x78] sm:$0xff] %v689
        %v740 = vpack.c.bf16 %v392, %v388
        %v741 = vpack.c.bf16 %v402, %v398
        %v742 = vpack.c.bf16 %v412, %v408
        %v743 = vpack.c.bf16 %v422, %v418
        %v744 = vpack.c.bf16 %v432, %v428
        %v745 = vpack.c.bf16 %v442, %v438
        %v746 = vpack.c.bf16 %v452, %v448
        %v747 = vpack.c.bf16 %v462, %v458
        %v756 = vunpack.c.l.b16 %v740
        %v757 = vunpack.c.h.b16 %v740
        %v758 = vunpack.c.l.b16 %v741
        %v759 = vunpack.c.h.b16 %v741
        %v760 = vunpack.c.l.b16 %v742
        %v761 = vunpack.c.h.b16 %v742
        %v762 = vunpack.c.l.b16 %v743
        %v763 = vunpack.c.h.b16 %v743
        %v764 = vunpack.c.l.b16 %v744
        %v765 = vunpack.c.h.b16 %v744
        %v766 = vunpack.c.l.b16 %v745
        %v767 = vunpack.c.h.b16 %v745
        %v768 = vunpack.c.l.b16 %v746
        %v769 = vunpack.c.h.b16 %v746
        %v770 = vunpack.c.l.b16 %v747
        %v771 = vunpack.c.h.b16 %v747
        %v772 = vpack.c.b16 %v756, %v756
        %v773 = vpack.c.b16 %v757, %v757
        %v774 = vpack.c.b16 %v758, %v758
        %v775 = vpack.c.b16 %v759, %v759
        %v776 = vpack.c.b16 %v760, %v760
        %v777 = vpack.c.b16 %v761, %v761
        %v778 = vpack.c.b16 %v762, %v762
        %v779 = vpack.c.b16 %v763, %v763
        %v780 = vpack.c.b16 %v764, %v764
        %v781 = vpack.c.b16 %v765, %v765
        %v782 = vpack.c.b16 %v766, %v766
        %v783 = vpack.c.b16 %v767, %v767
        %v784 = vpack.c.b16 %v768, %v768
        %v785 = vpack.c.b16 %v769, %v769
        %v786 = vpack.c.b16 %v770, %v770
        %v787 = vpack.c.b16 %v771, %v771
        %vm804 = vcmask 257024
        %805 = vst.msk [vmem:[%s236] sm:$0xf] %vm804, %v772
        %806 = vst.msk [vmem:[%s236 + $0x4] sm:$0xf] %vm804, %v773
        %807 = vst.msk [vmem:[%s236 + $0x8] sm:$0xf] %vm804, %v774
        %808 = vst.msk [vmem:[%s236 + $0xc] sm:$0xf] %vm804, %v775
        %809 = vst.msk [vmem:[%s236 + $0x10] sm:$0xf] %vm804, %v776
        %810 = vst.msk [vmem:[%s236 + $0x14] sm:$0xf] %vm804, %v777
        %811 = vst.msk [vmem:[%s236 + $0x18] sm:$0xf] %vm804, %v778
        %812 = vst.msk [vmem:[%s236 + $0x1c] sm:$0xf] %vm804, %v779
        %813 = vst.msk [vmem:[%s236 + $0x20] sm:$0xf] %vm804, %v780
        %814 = vst.msk [vmem:[%s236 + $0x24] sm:$0xf] %vm804, %v781
        %815 = vst.msk [vmem:[%s236 + $0x28] sm:$0xf] %vm804, %v782
        %816 = vst.msk [vmem:[%s236 + $0x2c] sm:$0xf] %vm804, %v783
        %817 = vst.msk [vmem:[%s236 + $0x30] sm:$0xf] %vm804, %v784
        %818 = vst.msk [vmem:[%s236 + $0x34] sm:$0xf] %vm804, %v785
        %819 = vst.msk [vmem:[%s236 + $0x38] sm:$0xf] %vm804, %v786
        %820 = vst.msk [vmem:[%s236 + $0x3c] sm:$0xf] %vm804, %v787
        %821 = vrot.lane.b32.xlu0 %v772, 96
        %v822 = vpop.permute.xlu0 %821
        %823 = vrot.lane.b32.xlu0 %v773, 96
        %v824 = vpop.permute.xlu0 %823
        %825 = vrot.lane.b32.xlu0 %v774, 96
        %v826 = vpop.permute.xlu0 %825
        %827 = vrot.lane.b32.xlu0 %v775, 96
        %v828 = vpop.permute.xlu0 %827
        %829 = vrot.lane.b32.xlu0 %v776, 96
        %v830 = vpop.permute.xlu0 %829
        %831 = vrot.lane.b32.xlu0 %v777, 96
        %v832 = vpop.permute.xlu0 %831
        %833 = vrot.lane.b32.xlu0 %v778, 96
        %v834 = vpop.permute.xlu0 %833
        %835 = vrot.lane.b32.xlu0 %v779, 96
        %v836 = vpop.permute.xlu0 %835
        %837 = vrot.lane.b32.xlu0 %v780, 96
        %v838 = vpop.permute.xlu0 %837
        %839 = vrot.lane.b32.xlu0 %v781, 96
        %v840 = vpop.permute.xlu0 %839
        %841 = vrot.lane.b32.xlu0 %v782, 96
        %v842 = vpop.permute.xlu0 %841
        %843 = vrot.lane.b32.xlu0 %v783, 96
        %v844 = vpop.permute.xlu0 %843
        %845 = vrot.lane.b32.xlu0 %v784, 96
        %v846 = vpop.permute.xlu0 %845
        %847 = vrot.lane.b32.xlu0 %v785, 96
        %v848 = vpop.permute.xlu0 %847
        %849 = vrot.lane.b32.xlu0 %v786, 96
        %v850 = vpop.permute.xlu0 %849
        %851 = vrot.lane.b32.xlu0 %v787, 96
        %v852 = vpop.permute.xlu0 %851
        %s869 = scalar_lea.vmem %s236, 64 [#allocation5]
        %870 = vst.msk [vmem:[%s869] sm:$0xf] %vm804, %v822
        %871 = vst.msk [vmem:[%s869 + $0x4] sm:$0xf] %vm804, %v824
        %872 = vst.msk [vmem:[%s869 + $0x8] sm:$0xf] %vm804, %v826
        %873 = vst.msk [vmem:[%s869 + $0xc] sm:$0xf] %vm804, %v828
        %874 = vst.msk [vmem:[%s869 + $0x10] sm:$0xf] %vm804, %v830
        %875 = vst.msk [vmem:[%s869 + $0x14] sm:$0xf] %vm804, %v832
        %876 = vst.msk [vmem:[%s869 + $0x18] sm:$0xf] %vm804, %v834
        %877 = vst.msk [vmem:[%s869 + $0x1c] sm:$0xf] %vm804, %v836
        %878 = vst.msk [vmem:[%s869 + $0x20] sm:$0xf] %vm804, %v838
        %879 = vst.msk [vmem:[%s869 + $0x24] sm:$0xf] %vm804, %v840
        %880 = vst.msk [vmem:[%s869 + $0x28] sm:$0xf] %vm804, %v842
        %881 = vst.msk [vmem:[%s869 + $0x2c] sm:$0xf] %vm804, %v844
        %882 = vst.msk [vmem:[%s869 + $0x30] sm:$0xf] %vm804, %v846
        %883 = vst.msk [vmem:[%s869 + $0x34] sm:$0xf] %vm804, %v848
        %884 = vst.msk [vmem:[%s869 + $0x38] sm:$0xf] %vm804, %v850
        %885 = vst.msk [vmem:[%s869 + $0x3c] sm:$0xf] %vm804, %v852
        %886 = vrot.lane.b32.xlu0 %v772, 64
        %v887 = vpop.permute.xlu0 %886
        %888 = vrot.lane.b32.xlu0 %v773, 64
        %v889 = vpop.permute.xlu0 %888
        %890 = vrot.lane.b32.xlu0 %v774, 64
        %v891 = vpop.permute.xlu0 %890
        %892 = vrot.lane.b32.xlu0 %v775, 64
        %v893 = vpop.permute.xlu0 %892
        %894 = vrot.lane.b32.xlu0 %v776, 64
        %v895 = vpop.permute.xlu0 %894
        %896 = vrot.lane.b32.xlu0 %v777, 64
        %v897 = vpop.permute.xlu0 %896
        %898 = vrot.lane.b32.xlu0 %v778, 64
        %v899 = vpop.permute.xlu0 %898
        %900 = vrot.lane.b32.xlu0 %v779, 64
        %v901 = vpop.permute.xlu0 %900
        %902 = vrot.lane.b32.xlu0 %v780, 64
        %v903 = vpop.permute.xlu0 %902
        %904 = vrot.lane.b32.xlu0 %v781, 64
        %v905 = vpop.permute.xlu0 %904
        %906 = vrot.lane.b32.xlu0 %v782, 64
        %v907 = vpop.permute.xlu0 %906
        %908 = vrot.lane.b32.xlu0 %v783, 64
        %v909 = vpop.permute.xlu0 %908
        %910 = vrot.lane.b32.xlu0 %v784, 64
        %v911 = vpop.permute.xlu0 %910
        %912 = vrot.lane.b32.xlu0 %v785, 64
        %v913 = vpop.permute.xlu0 %912
        %914 = vrot.lane.b32.xlu0 %v786, 64
        %v915 = vpop.permute.xlu0 %914
        %916 = vrot.lane.b32.xlu0 %v787, 64
        %v917 = vpop.permute.xlu0 %916
        %s934 = scalar_lea.vmem %s236, 128 [#allocation5]
        %935 = vst.msk [vmem:[%s934] sm:$0xf] %vm804, %v887
        %936 = vst.msk [vmem:[%s934 + $0x4] sm:$0xf] %vm804, %v889
        %937 = vst.msk [vmem:[%s934 + $0x8] sm:$0xf] %vm804, %v891
        %938 = vst.msk [vmem:[%s934 + $0xc] sm:$0xf] %vm804, %v893
        %939 = vst.msk [vmem:[%s934 + $0x10] sm:$0xf] %vm804, %v895
        %940 = vst.msk [vmem:[%s934 + $0x14] sm:$0xf] %vm804, %v897
        %941 = vst.msk [vmem:[%s934 + $0x18] sm:$0xf] %vm804, %v899
        %942 = vst.msk [vmem:[%s934 + $0x1c] sm:$0xf] %vm804, %v901
        %943 = vst.msk [vmem:[%s934 + $0x20] sm:$0xf] %vm804, %v903
        %944 = vst.msk [vmem:[%s934 + $0x24] sm:$0xf] %vm804, %v905
        %945 = vst.msk [vmem:[%s934 + $0x28] sm:$0xf] %vm804, %v907
        %946 = vst.msk [vmem:[%s934 + $0x2c] sm:$0xf] %vm804, %v909
        %947 = vst.msk [vmem:[%s934 + $0x30] sm:$0xf] %vm804, %v911
        %948 = vst.msk [vmem:[%s934 + $0x34] sm:$0xf] %vm804, %v913
        %949 = vst.msk [vmem:[%s934 + $0x38] sm:$0xf] %vm804, %v915
        %950 = vst.msk [vmem:[%s934 + $0x3c] sm:$0xf] %vm804, %v917
        %951 = vrot.lane.b32.xlu0 %v772, 32
        %v952 = vpop.permute.xlu0 %951
        %953 = vrot.lane.b32.xlu0 %v773, 32
        %v954 = vpop.permute.xlu0 %953
        %955 = vrot.lane.b32.xlu0 %v774, 32
        %v956 = vpop.permute.xlu0 %955
        %957 = vrot.lane.b32.xlu0 %v775, 32
        %v958 = vpop.permute.xlu0 %957
        %959 = vrot.lane.b32.xlu0 %v776, 32
        %v960 = vpop.permute.xlu0 %959
        %961 = vrot.lane.b32.xlu0 %v777, 32
        %v962 = vpop.permute.xlu0 %961
        %963 = vrot.lane.b32.xlu0 %v778, 32
        %v964 = vpop.permute.xlu0 %963
        %965 = vrot.lane.b32.xlu0 %v779, 32
        %v966 = vpop.permute.xlu0 %965
        %967 = vrot.lane.b32.xlu0 %v780, 32
        %v968 = vpop.permute.xlu0 %967
        %969 = vrot.lane.b32.xlu0 %v781, 32
        %v970 = vpop.permute.xlu0 %969
        %971 = vrot.lane.b32.xlu0 %v782, 32
        %v972 = vpop.permute.xlu0 %971
        %973 = vrot.lane.b32.xlu0 %v783, 32
        %v974 = vpop.permute.xlu0 %973
        %975 = vrot.lane.b32.xlu0 %v784, 32
        %v976 = vpop.permute.xlu0 %975
        %977 = vrot.lane.b32.xlu0 %v785, 32
        %v978 = vpop.permute.xlu0 %977
        %979 = vrot.lane.b32.xlu0 %v786, 32
        %v980 = vpop.permute.xlu0 %979
        %981 = vrot.lane.b32.xlu0 %v787, 32
        %v982 = vpop.permute.xlu0 %981
        %s999 = scalar_lea.vmem %s236, 192 [#allocation5]
        %1000 = vst.msk [vmem:[%s999] sm:$0xf] %vm804, %v952
        %1001 = vst.msk [vmem:[%s999 + $0x4] sm:$0xf] %vm804, %v954
        %1002 = vst.msk [vmem:[%s999 + $0x8] sm:$0xf] %vm804, %v956
        %1003 = vst.msk [vmem:[%s999 + $0xc] sm:$0xf] %vm804, %v958
        %1004 = vst.msk [vmem:[%s999 + $0x10] sm:$0xf] %vm804, %v960
        %1005 = vst.msk [vmem:[%s999 + $0x14] sm:$0xf] %vm804, %v962
        %1006 = vst.msk [vmem:[%s999 + $0x18] sm:$0xf] %vm804, %v964
        %1007 = vst.msk [vmem:[%s999 + $0x1c] sm:$0xf] %vm804, %v966
        %1008 = vst.msk [vmem:[%s999 + $0x20] sm:$0xf] %vm804, %v968
        %1009 = vst.msk [vmem:[%s999 + $0x24] sm:$0xf] %vm804, %v970
        %1010 = vst.msk [vmem:[%s999 + $0x28] sm:$0xf] %vm804, %v972
        %1011 = vst.msk [vmem:[%s999 + $0x2c] sm:$0xf] %vm804, %v974
        %1012 = vst.msk [vmem:[%s999 + $0x30] sm:$0xf] %vm804, %v976
        %1013 = vst.msk [vmem:[%s999 + $0x34] sm:$0xf] %vm804, %v978
        %1014 = vst.msk [vmem:[%s999 + $0x38] sm:$0xf] %vm804, %v980
        %1015 = vst.msk [vmem:[%s999 + $0x3c] sm:$0xf] %vm804, %v982
        %v1016 = vpack.c.bf16 %v394, %v390
        %v1017 = vpack.c.bf16 %v404, %v400
        %v1018 = vpack.c.bf16 %v414, %v410
        %v1019 = vpack.c.bf16 %v424, %v420
        %v1020 = vpack.c.bf16 %v434, %v430
        %v1021 = vpack.c.bf16 %v444, %v440
        %v1022 = vpack.c.bf16 %v454, %v450
        %v1023 = vpack.c.bf16 %v464, %v460
        %v1032 = vunpack.c.l.b16 %v1016
        %v1033 = vunpack.c.h.b16 %v1016
        %v1034 = vunpack.c.l.b16 %v1017
        %v1035 = vunpack.c.h.b16 %v1017
        %v1036 = vunpack.c.l.b16 %v1018
        %v1037 = vunpack.c.h.b16 %v1018
        %v1038 = vunpack.c.l.b16 %v1019
        %v1039 = vunpack.c.h.b16 %v1019
        %v1040 = vunpack.c.l.b16 %v1020
        %v1041 = vunpack.c.h.b16 %v1020
        %v1042 = vunpack.c.l.b16 %v1021
        %v1043 = vunpack.c.h.b16 %v1021
        %v1044 = vunpack.c.l.b16 %v1022
        %v1045 = vunpack.c.h.b16 %v1022
        %v1046 = vunpack.c.l.b16 %v1023
        %v1047 = vunpack.c.h.b16 %v1023
        %v1048 = vpack.c.b16 %v1032, %v1032
        %v1049 = vpack.c.b16 %v1033, %v1033
        %v1050 = vpack.c.b16 %v1034, %v1034
        %v1051 = vpack.c.b16 %v1035, %v1035
        %v1052 = vpack.c.b16 %v1036, %v1036
        %v1053 = vpack.c.b16 %v1037, %v1037
        %v1054 = vpack.c.b16 %v1038, %v1038
        %v1055 = vpack.c.b16 %v1039, %v1039
        %v1056 = vpack.c.b16 %v1040, %v1040
        %v1057 = vpack.c.b16 %v1041, %v1041
        %v1058 = vpack.c.b16 %v1042, %v1042
        %v1059 = vpack.c.b16 %v1043, %v1043
        %v1060 = vpack.c.b16 %v1044, %v1044
        %v1061 = vpack.c.b16 %v1045, %v1045
        %v1062 = vpack.c.b16 %v1046, %v1046
        %v1063 = vpack.c.b16 %v1047, %v1047
        %s1080 = scalar_lea.vmem %s236, 256 [#allocation5]
        %1081 = vst.msk [vmem:[%s1080] sm:$0xf] %vm804, %v1048
        %1082 = vst.msk [vmem:[%s1080 + $0x4] sm:$0xf] %vm804, %v1049
        %1083 = vst.msk [vmem:[%s1080 + $0x8] sm:$0xf] %vm804, %v1050
        %1084 = vst.msk [vmem:[%s1080 + $0xc] sm:$0xf] %vm804, %v1051
        %1085 = vst.msk [vmem:[%s1080 + $0x10] sm:$0xf] %vm804, %v1052
        %1086 = vst.msk [vmem:[%s1080 + $0x14] sm:$0xf] %vm804, %v1053
        %1087 = vst.msk [vmem:[%s1080 + $0x18] sm:$0xf] %vm804, %v1054
        %1088 = vst.msk [vmem:[%s1080 + $0x1c] sm:$0xf] %vm804, %v1055
        %1089 = vst.msk [vmem:[%s1080 + $0x20] sm:$0xf] %vm804, %v1056
        %1090 = vst.msk [vmem:[%s1080 + $0x24] sm:$0xf] %vm804, %v1057
        %1091 = vst.msk [vmem:[%s1080 + $0x28] sm:$0xf] %vm804, %v1058
        %1092 = vst.msk [vmem:[%s1080 + $0x2c] sm:$0xf] %vm804, %v1059
        %1093 = vst.msk [vmem:[%s1080 + $0x30] sm:$0xf] %vm804, %v1060
        %1094 = vst.msk [vmem:[%s1080 + $0x34] sm:$0xf] %vm804, %v1061
        %1095 = vst.msk [vmem:[%s1080 + $0x38] sm:$0xf] %vm804, %v1062
        %1096 = vst.msk [vmem:[%s1080 + $0x3c] sm:$0xf] %vm804, %v1063
        %1097 = vrot.lane.b32.xlu0 %v1048, 96
        %v1098 = vpop.permute.xlu0 %1097
        %1099 = vrot.lane.b32.xlu0 %v1049, 96
        %v1100 = vpop.permute.xlu0 %1099
        %1101 = vrot.lane.b32.xlu0 %v1050, 96
        %v1102 = vpop.permute.xlu0 %1101
        %1103 = vrot.lane.b32.xlu0 %v1051, 96
        %v1104 = vpop.permute.xlu0 %1103
        %1105 = vrot.lane.b32.xlu0 %v1052, 96
        %v1106 = vpop.permute.xlu0 %1105
        %1107 = vrot.lane.b32.xlu0 %v1053, 96
        %v1108 = vpop.permute.xlu0 %1107
        %1109 = vrot.lane.b32.xlu0 %v1054, 96
        %v1110 = vpop.permute.xlu0 %1109
        %1111 = vrot.lane.b32.xlu0 %v1055, 96
        %v1112 = vpop.permute.xlu0 %1111
        %1113 = vrot.lane.b32.xlu0 %v1056, 96
        %v1114 = vpop.permute.xlu0 %1113
        %1115 = vrot.lane.b32.xlu0 %v1057, 96
        %v1116 = vpop.permute.xlu0 %1115
        %1117 = vrot.lane.b32.xlu0 %v1058, 96
        %v1118 = vpop.permute.xlu0 %1117
        %1119 = vrot.lane.b32.xlu0 %v1059, 96
        %v1120 = vpop.permute.xlu0 %1119
        %1121 = vrot.lane.b32.xlu0 %v1060, 96
        %v1122 = vpop.permute.xlu0 %1121
        %1123 = vrot.lane.b32.xlu0 %v1061, 96
        %v1124 = vpop.permute.xlu0 %1123
        %1125 = vrot.lane.b32.xlu0 %v1062, 96
        %v1126 = vpop.permute.xlu0 %1125
        %1127 = vrot.lane.b32.xlu0 %v1063, 96
        %v1128 = vpop.permute.xlu0 %1127
        %s1145 = scalar_lea.vmem %s236, 320 [#allocation5]
        %1146 = vst.msk [vmem:[%s1145] sm:$0xf] %vm804, %v1098
        %1147 = vst.msk [vmem:[%s1145 + $0x4] sm:$0xf] %vm804, %v1100
        %1148 = vst.msk [vmem:[%s1145 + $0x8] sm:$0xf] %vm804, %v1102
        %1149 = vst.msk [vmem:[%s1145 + $0xc] sm:$0xf] %vm804, %v1104
        %1150 = vst.msk [vmem:[%s1145 + $0x10] sm:$0xf] %vm804, %v1106
        %1151 = vst.msk [vmem:[%s1145 + $0x14] sm:$0xf] %vm804, %v1108
        %1152 = vst.msk [vmem:[%s1145 + $0x18] sm:$0xf] %vm804, %v1110
        %1153 = vst.msk [vmem:[%s1145 + $0x1c] sm:$0xf] %vm804, %v1112
        %1154 = vst.msk [vmem:[%s1145 + $0x20] sm:$0xf] %vm804, %v1114
        %1155 = vst.msk [vmem:[%s1145 + $0x24] sm:$0xf] %vm804, %v1116
        %1156 = vst.msk [vmem:[%s1145 + $0x28] sm:$0xf] %vm804, %v1118
        %1157 = vst.msk [vmem:[%s1145 + $0x2c] sm:$0xf] %vm804, %v1120
        %1158 = vst.msk [vmem:[%s1145 + $0x30] sm:$0xf] %vm804, %v1122
        %1159 = vst.msk [vmem:[%s1145 + $0x34] sm:$0xf] %vm804, %v1124
        %1160 = vst.msk [vmem:[%s1145 + $0x38] sm:$0xf] %vm804, %v1126
        %1161 = vst.msk [vmem:[%s1145 + $0x3c] sm:$0xf] %vm804, %v1128
        %1162 = vrot.lane.b32.xlu0 %v1048, 64
        %v1163 = vpop.permute.xlu0 %1162
        %1164 = vrot.lane.b32.xlu0 %v1049, 64
        %v1165 = vpop.permute.xlu0 %1164
        %1166 = vrot.lane.b32.xlu0 %v1050, 64
        %v1167 = vpop.permute.xlu0 %1166
        %1168 = vrot.lane.b32.xlu0 %v1051, 64
        %v1169 = vpop.permute.xlu0 %1168
        %1170 = vrot.lane.b32.xlu0 %v1052, 64
        %v1171 = vpop.permute.xlu0 %1170
        %1172 = vrot.lane.b32.xlu0 %v1053, 64
        %v1173 = vpop.permute.xlu0 %1172
        %1174 = vrot.lane.b32.xlu0 %v1054, 64
        %v1175 = vpop.permute.xlu0 %1174
        %1176 = vrot.lane.b32.xlu0 %v1055, 64
        %v1177 = vpop.permute.xlu0 %1176
        %1178 = vrot.lane.b32.xlu0 %v1056, 64
        %v1179 = vpop.permute.xlu0 %1178
        %1180 = vrot.lane.b32.xlu0 %v1057, 64
        %v1181 = vpop.permute.xlu0 %1180
        %1182 = vrot.lane.b32.xlu0 %v1058, 64
        %v1183 = vpop.permute.xlu0 %1182
        %1184 = vrot.lane.b32.xlu0 %v1059, 64
        %v1185 = vpop.permute.xlu0 %1184
        %1186 = vrot.lane.b32.xlu0 %v1060, 64
        %v1187 = vpop.permute.xlu0 %1186
        %1188 = vrot.lane.b32.xlu0 %v1061, 64
        %v1189 = vpop.permute.xlu0 %1188
        %1190 = vrot.lane.b32.xlu0 %v1062, 64
        %v1191 = vpop.permute.xlu0 %1190
        %1192 = vrot.lane.b32.xlu0 %v1063, 64
        %v1193 = vpop.permute.xlu0 %1192
        %s1210 = scalar_lea.vmem %s236, 384 [#allocation5]
        %1211 = vst.msk [vmem:[%s1210] sm:$0xf] %vm804, %v1163
        %1212 = vst.msk [vmem:[%s1210 + $0x4] sm:$0xf] %vm804, %v1165
        %1213 = vst.msk [vmem:[%s1210 + $0x8] sm:$0xf] %vm804, %v1167
        %1214 = vst.msk [vmem:[%s1210 + $0xc] sm:$0xf] %vm804, %v1169
        %1215 = vst.msk [vmem:[%s1210 + $0x10] sm:$0xf] %vm804, %v1171
        %1216 = vst.msk [vmem:[%s1210 + $0x14] sm:$0xf] %vm804, %v1173
        %1217 = vst.msk [vmem:[%s1210 + $0x18] sm:$0xf] %vm804, %v1175
        %1218 = vst.msk [vmem:[%s1210 + $0x1c] sm:$0xf] %vm804, %v1177
        %1219 = vst.msk [vmem:[%s1210 + $0x20] sm:$0xf] %vm804, %v1179
        %1220 = vst.msk [vmem:[%s1210 + $0x24] sm:$0xf] %vm804, %v1181
        %1221 = vst.msk [vmem:[%s1210 + $0x28] sm:$0xf] %vm804, %v1183
        %1222 = vst.msk [vmem:[%s1210 + $0x2c] sm:$0xf] %vm804, %v1185
        %1223 = vst.msk [vmem:[%s1210 + $0x30] sm:$0xf] %vm804, %v1187
        %1224 = vst.msk [vmem:[%s1210 + $0x34] sm:$0xf] %vm804, %v1189
        %1225 = vst.msk [vmem:[%s1210 + $0x38] sm:$0xf] %vm804, %v1191
        %1226 = vst.msk [vmem:[%s1210 + $0x3c] sm:$0xf] %vm804, %v1193
        %1227 = vrot.lane.b32.xlu0 %v1048, 32
        %v1228 = vpop.permute.xlu0 %1227
        %1229 = vrot.lane.b32.xlu0 %v1049, 32
        %v1230 = vpop.permute.xlu0 %1229
        %1231 = vrot.lane.b32.xlu0 %v1050, 32
        %v1232 = vpop.permute.xlu0 %1231
        %1233 = vrot.lane.b32.xlu0 %v1051, 32
        %v1234 = vpop.permute.xlu0 %1233
        %1235 = vrot.lane.b32.xlu0 %v1052, 32
        %v1236 = vpop.permute.xlu0 %1235
        %1237 = vrot.lane.b32.xlu0 %v1053, 32
        %v1238 = vpop.permute.xlu0 %1237
        %1239 = vrot.lane.b32.xlu0 %v1054, 32
        %v1240 = vpop.permute.xlu0 %1239
        %1241 = vrot.lane.b32.xlu0 %v1055, 32
        %v1242 = vpop.permute.xlu0 %1241
        %1243 = vrot.lane.b32.xlu0 %v1056, 32
        %v1244 = vpop.permute.xlu0 %1243
        %1245 = vrot.lane.b32.xlu0 %v1057, 32
        %v1246 = vpop.permute.xlu0 %1245
        %1247 = vrot.lane.b32.xlu0 %v1058, 32
        %v1248 = vpop.permute.xlu0 %1247
        %1249 = vrot.lane.b32.xlu0 %v1059, 32
        %v1250 = vpop.permute.xlu0 %1249
        %1251 = vrot.lane.b32.xlu0 %v1060, 32
        %v1252 = vpop.permute.xlu0 %1251
        %1253 = vrot.lane.b32.xlu0 %v1061, 32
        %v1254 = vpop.permute.xlu0 %1253
        %1255 = vrot.lane.b32.xlu0 %v1062, 32
        %v1256 = vpop.permute.xlu0 %1255
        %1257 = vrot.lane.b32.xlu0 %v1063, 32
        %v1258 = vpop.permute.xlu0 %1257
        %s1275 = scalar_lea.vmem %s236, 448 [#allocation5]
        %1276 = vst.msk [vmem:[%s1275] sm:$0xf] %vm804, %v1228
        %1277 = vst.msk [vmem:[%s1275 + $0x4] sm:$0xf] %vm804, %v1230
        %1278 = vst.msk [vmem:[%s1275 + $0x8] sm:$0xf] %vm804, %v1232
        %1279 = vst.msk [vmem:[%s1275 + $0xc] sm:$0xf] %vm804, %v1234
        %1280 = vst.msk [vmem:[%s1275 + $0x10] sm:$0xf] %vm804, %v1236
        %1281 = vst.msk [vmem:[%s1275 + $0x14] sm:$0xf] %vm804, %v1238
        %1282 = vst.msk [vmem:[%s1275 + $0x18] sm:$0xf] %vm804, %v1240
        %1283 = vst.msk [vmem:[%s1275 + $0x1c] sm:$0xf] %vm804, %v1242
        %1284 = vst.msk [vmem:[%s1275 + $0x20] sm:$0xf] %vm804, %v1244
        %1285 = vst.msk [vmem:[%s1275 + $0x24] sm:$0xf] %vm804, %v1246
        %1286 = vst.msk [vmem:[%s1275 + $0x28] sm:$0xf] %vm804, %v1248
        %1287 = vst.msk [vmem:[%s1275 + $0x2c] sm:$0xf] %vm804, %v1250
        %1288 = vst.msk [vmem:[%s1275 + $0x30] sm:$0xf] %vm804, %v1252
        %1289 = vst.msk [vmem:[%s1275 + $0x34] sm:$0xf] %vm804, %v1254
        %1290 = vst.msk [vmem:[%s1275 + $0x38] sm:$0xf] %vm804, %v1256
        %1291 = vst.msk [vmem:[%s1275 + $0x3c] sm:$0xf] %vm804, %v1258
        %s1292 = sand.u32 %s100, 1
        %s1293 = sand.u32 %s100, 1
        %s1294 = smul.addr %s1293, 512
        %s1295 = scalar_lea.vmem [#allocation5], %s1294
        %s1296 = sand.u32 %s126, 1
        %s1297 = scalar_lea.sflag [#allocation4], %s1296
        %s1298 = sand.u32 %s126, 1
        %s1299 = smul.addr %s1298, 8
        %s1300 = scalar_lea.vmem [#allocation6], %s1299
        %s1301 = sand.u32 %s152, 1
        %s1302 = scalar_lea.sflag [#allocation8], %s1301
        %s1303 = sand.u32 %s152, 1
        %s1304 = smul.addr %s1303, 128
        %s1305 = scalar_lea.vmem [#allocation7], %s1304
        // Predicated region
        $region37: #{tpu_custom_call.1} parent=31 // pred_check
          %p1306 = pneg %p110
        $region38: #{tpu_custom_call.1} parent=31 // pred_check_branch
          %1308 = sbr.rel (%p1306) target = $region40
        $region39: #{tpu_custom_call.1} parent=31 // pred_region
          %s1309 = smul.u32 16, %s24
          %s1310 = smul.addr %s1309, 4
          %s1311 = scalar_lea.vmem %s3, %s1310
          // Predicated region
          $region41: #{tpu_custom_call.1} parent=39 // pred_check
            _
          $region42: #{tpu_custom_call.1} parent=39 // pred_check_branch
            %1313 = sbr.rel (0) target = $region44
          $region43: #{tpu_custom_call.1} parent=39 // pred_region
            // Predicated region
            $region45: #{tpu_custom_call.1} parent=43 // pred_check
              _
            $region46: #{tpu_custom_call.1} parent=43 // pred_check_branch
              %1315 = sbr.rel target = $region48
            $region47: #{tpu_custom_call.1} parent=43 // pred_region
              // Predicated region
              $region60: #{tpu_custom_call.1} parent=47 // pred_check
                _
              $region61: #{tpu_custom_call.1} parent=47 // pred_check_branch
                %1585 = sbr.rel (0) target = $region63
              $region62: #{tpu_custom_call.1} parent=47 // pred_region
                loop: start=0, step=1, limit=1
                $region64: #{tpu_custom_call.1} parent=62 // loop_pre_header
                  _
                $region65: #{tpu_custom_call.1} parent=62 // loop_header
                  %s1587 = sphi 0, %s1591
                  %p1588 = scmp.ge.s32.totalorder %s1587, 1
                  %s1592 = sphi %s1295, %s1295
                  %s1593 = sphi %s1311, %s1311
                $region66: #{tpu_custom_call.1} parent=62 // loop_header_branch
                  %1590 = sbr.rel (%p1588) target = $region70
                $region67: #{tpu_custom_call.1} parent=62 // loop_body
                  _
                $region68: #{tpu_custom_call.1} parent=62 // loop_footer
                  %s1591 = sadd.s32 1, %s1587
                $region69: #{tpu_custom_call.1} parent=62 // loop_footer_branch
                  %1586 = sbr.rel target = $region65
                $region70: #{tpu_custom_call.1} parent=62 // loop_exit
                  _
                %s1595 = ssub.s32 16, 1
                loop: start=0, step=1, limit=1
                $region71: #{tpu_custom_call.1} parent=62 // loop_pre_header
                  _
                $region72: #{tpu_custom_call.1} parent=62 // loop_header
                  %s1597 = sphi 0, %s1601
                  %p1598 = scmp.ge.s32.totalorder %s1597, 1
                  %s1602 = sphi %s1295, %s1295
                  %s1603 = sphi %s1311, %s1311
                $region73: #{tpu_custom_call.1} parent=62 // loop_header_branch
                  %1600 = sbr.rel (%p1598) target = $region77
                $region74: #{tpu_custom_call.1} parent=62 // loop_body
                  %v1604 = vld [vmem:[%s1602] sm:%s1595]
                  %1605 = vst [vmem:[%s1603] sm:%s1595] %v1604
                  %v1606 = vld [vmem:[%s1602 + $0x4] sm:%s1595]
                  %1607 = vst [vmem:[%s1603 + $0x4] sm:%s1595] %v1606
                  %v1608 = vld [vmem:[%s1602 + $0x8] sm:%s1595]
                  %1609 = vst [vmem:[%s1603 + $0x8] sm:%s1595] %v1608
                  %v1610 = vld [vmem:[%s1602 + $0xc] sm:%s1595]
                  %1611 = vst [vmem:[%s1603 + $0xc] sm:%s1595] %v1610
                  %v1612 = vld [vmem:[%s1602 + $0x10] sm:%s1595]
                  %1613 = vst [vmem:[%s1603 + $0x10] sm:%s1595] %v1612
                  %v1614 = vld [vmem:[%s1602 + $0x14] sm:%s1595]
                  %1615 = vst [vmem:[%s1603 + $0x14] sm:%s1595] %v1614
                  %v1616 = vld [vmem:[%s1602 + $0x18] sm:%s1595]
                  %1617 = vst [vmem:[%s1603 + $0x18] sm:%s1595] %v1616
                  %v1618 = vld [vmem:[%s1602 + $0x1c] sm:%s1595]
                  %1619 = vst [vmem:[%s1603 + $0x1c] sm:%s1595] %v1618
                  %v1620 = vld [vmem:[%s1602 + $0x20] sm:%s1595]
                  %1621 = vst [vmem:[%s1603 + $0x20] sm:%s1595] %v1620
                  %v1622 = vld [vmem:[%s1602 + $0x24] sm:%s1595]
                  %1623 = vst [vmem:[%s1603 + $0x24] sm:%s1595] %v1622
                  %v1624 = vld [vmem:[%s1602 + $0x28] sm:%s1595]
                  %1625 = vst [vmem:[%s1603 + $0x28] sm:%s1595] %v1624
                  %v1626 = vld [vmem:[%s1602 + $0x2c] sm:%s1595]
                  %1627 = vst [vmem:[%s1603 + $0x2c] sm:%s1595] %v1626
                  %v1628 = vld [vmem:[%s1602 + $0x30] sm:%s1595]
                  %1629 = vst [vmem:[%s1603 + $0x30] sm:%s1595] %v1628
                  %v1630 = vld [vmem:[%s1602 + $0x34] sm:%s1595]
                  %1631 = vst [vmem:[%s1603 + $0x34] sm:%s1595] %v1630
                  %v1632 = vld [vmem:[%s1602 + $0x38] sm:%s1595]
                  %1633 = vst [vmem:[%s1603 + $0x38] sm:%s1595] %v1632
                  %v1634 = vld [vmem:[%s1602 + $0x3c] sm:%s1595]
                  %1635 = vst [vmem:[%s1603 + $0x3c] sm:%s1595] %v1634
                  %v1636 = vld [vmem:[%s1602 + $0x40] sm:%s1595]
                  %1637 = vst [vmem:[%s1603 + $0x80] sm:%s1595] %v1636
                  %v1638 = vld [vmem:[%s1602 + $0x44] sm:%s1595]
                  %1639 = vst [vmem:[%s1603 + $0x84] sm:%s1595] %v1638
                  %v1640 = vld [vmem:[%s1602 + $0x48] sm:%s1595]
                  %1641 = vst [vmem:[%s1603 + $0x88] sm:%s1595] %v1640
                  %v1642 = vld [vmem:[%s1602 + $0x4c] sm:%s1595]
                  %1643 = vst [vmem:[%s1603 + $0x8c] sm:%s1595] %v1642
                  %v1644 = vld [vmem:[%s1602 + $0x50] sm:%s1595]
                  %1645 = vst [vmem:[%s1603 + $0x90] sm:%s1595] %v1644
                  %v1646 = vld [vmem:[%s1602 + $0x54] sm:%s1595]
                  %1647 = vst [vmem:[%s1603 + $0x94] sm:%s1595] %v1646
                  %v1648 = vld [vmem:[%s1602 + $0x58] sm:%s1595]
                  %1649 = vst [vmem:[%s1603 + $0x98] sm:%s1595] %v1648
                  %v1650 = vld [vmem:[%s1602 + $0x5c] sm:%s1595]
                  %1651 = vst [vmem:[%s1603 + $0x9c] sm:%s1595] %v1650
                  %v1652 = vld [vmem:[%s1602 + $0x60] sm:%s1595]
                  %1653 = vst [vmem:[%s1603 + $0xa0] sm:%s1595] %v1652
                  %v1654 = vld [vmem:[%s1602 + $0x64] sm:%s1595]
                  %1655 = vst [vmem:[%s1603 + $0xa4] sm:%s1595] %v1654
                  %v1656 = vld [vmem:[%s1602 + $0x68] sm:%s1595]
                  %1657 = vst [vmem:[%s1603 + $0xa8] sm:%s1595] %v1656
                  %v1658 = vld [vmem:[%s1602 + $0x6c] sm:%s1595]
                  %1659 = vst [vmem:[%s1603 + $0xac] sm:%s1595] %v1658
                  %v1660 = vld [vmem:[%s1602 + $0x70] sm:%s1595]
                  %1661 = vst [vmem:[%s1603 + $0xb0] sm:%s1595] %v1660
                  %v1662 = vld [vmem:[%s1602 + $0x74] sm:%s1595]
                  %1663 = vst [vmem:[%s1603 + $0xb4] sm:%s1595] %v1662
                  %v1664 = vld [vmem:[%s1602 + $0x78] sm:%s1595]
                  %1665 = vst [vmem:[%s1603 + $0xb8] sm:%s1595] %v1664
                  %v1666 = vld [vmem:[%s1602 + $0x7c] sm:%s1595]
                  %1667 = vst [vmem:[%s1603 + $0xbc] sm:%s1595] %v1666
                  %v1668 = vld [vmem:[%s1602 + $0x80] sm:%s1595]
                  %1669 = vst [vmem:[%s1603 + $0x100] sm:%s1595] %v1668
                  %v1670 = vld [vmem:[%s1602 + $0x84] sm:%s1595]
                  %1671 = vst [vmem:[%s1603 + $0x104] sm:%s1595] %v1670
                  %v1672 = vld [vmem:[%s1602 + $0x88] sm:%s1595]
                  %1673 = vst [vmem:[%s1603 + $0x108] sm:%s1595] %v1672
                  %v1674 = vld [vmem:[%s1602 + $0x8c] sm:%s1595]
                  %1675 = vst [vmem:[%s1603 + $0x10c] sm:%s1595] %v1674
                  %v1676 = vld [vmem:[%s1602 + $0x90] sm:%s1595]
                  %1677 = vst [vmem:[%s1603 + $0x110] sm:%s1595] %v1676
                  %v1678 = vld [vmem:[%s1602 + $0x94] sm:%s1595]
                  %1679 = vst [vmem:[%s1603 + $0x114] sm:%s1595] %v1678
                  %v1680 = vld [vmem:[%s1602 + $0x98] sm:%s1595]
                  %1681 = vst [vmem:[%s1603 + $0x118] sm:%s1595] %v1680
                  %v1682 = vld [vmem:[%s1602 + $0x9c] sm:%s1595]
                  %1683 = vst [vmem:[%s1603 + $0x11c] sm:%s1595] %v1682
                  %v1684 = vld [vmem:[%s1602 + $0xa0] sm:%s1595]
                  %1685 = vst [vmem:[%s1603 + $0x120] sm:%s1595] %v1684
                  %v1686 = vld [vmem:[%s1602 + $0xa4] sm:%s1595]
                  %1687 = vst [vmem:[%s1603 + $0x124] sm:%s1595] %v1686
                  %v1688 = vld [vmem:[%s1602 + $0xa8] sm:%s1595]
                  %1689 = vst [vmem:[%s1603 + $0x128] sm:%s1595] %v1688
                  %v1690 = vld [vmem:[%s1602 + $0xac] sm:%s1595]
                  %1691 = vst [vmem:[%s1603 + $0x12c] sm:%s1595] %v1690
                  %v1692 = vld [vmem:[%s1602 + $0xb0] sm:%s1595]
                  %1693 = vst [vmem:[%s1603 + $0x130] sm:%s1595] %v1692
                  %v1694 = vld [vmem:[%s1602 + $0xb4] sm:%s1595]
                  %1695 = vst [vmem:[%s1603 + $0x134] sm:%s1595] %v1694
                  %v1696 = vld [vmem:[%s1602 + $0xb8] sm:%s1595]
                  %1697 = vst [vmem:[%s1603 + $0x138] sm:%s1595] %v1696
                  %v1698 = vld [vmem:[%s1602 + $0xbc] sm:%s1595]
                  %1699 = vst [vmem:[%s1603 + $0x13c] sm:%s1595] %v1698
                  %v1700 = vld [vmem:[%s1602 + $0xc0] sm:%s1595]
                  %1701 = vst [vmem:[%s1603 + $0x180] sm:%s1595] %v1700
                  %v1702 = vld [vmem:[%s1602 + $0xc4] sm:%s1595]
                  %1703 = vst [vmem:[%s1603 + $0x184] sm:%s1595] %v1702
                  %v1704 = vld [vmem:[%s1602 + $0xc8] sm:%s1595]
                  %1705 = vst [vmem:[%s1603 + $0x188] sm:%s1595] %v1704
                  %v1706 = vld [vmem:[%s1602 + $0xcc] sm:%s1595]
                  %1707 = vst [vmem:[%s1603 + $0x18c] sm:%s1595] %v1706
                  %v1708 = vld [vmem:[%s1602 + $0xd0] sm:%s1595]
                  %1709 = vst [vmem:[%s1603 + $0x190] sm:%s1595] %v1708
                  %v1710 = vld [vmem:[%s1602 + $0xd4] sm:%s1595]
                  %1711 = vst [vmem:[%s1603 + $0x194] sm:%s1595] %v1710
                  %v1712 = vld [vmem:[%s1602 + $0xd8] sm:%s1595]
                  %1713 = vst [vmem:[%s1603 + $0x198] sm:%s1595] %v1712
                  %v1714 = vld [vmem:[%s1602 + $0xdc] sm:%s1595]
                  %1715 = vst [vmem:[%s1603 + $0x19c] sm:%s1595] %v1714
                  %v1716 = vld [vmem:[%s1602 + $0xe0] sm:%s1595]
                  %1717 = vst [vmem:[%s1603 + $0x1a0] sm:%s1595] %v1716
                  %v1718 = vld [vmem:[%s1602 + $0xe4] sm:%s1595]
                  %1719 = vst [vmem:[%s1603 + $0x1a4] sm:%s1595] %v1718
                  %v1720 = vld [vmem:[%s1602 + $0xe8] sm:%s1595]
                  %1721 = vst [vmem:[%s1603 + $0x1a8] sm:%s1595] %v1720
                  %v1722 = vld [vmem:[%s1602 + $0xec] sm:%s1595]
                  %1723 = vst [vmem:[%s1603 + $0x1ac] sm:%s1595] %v1722
                  %v1724 = vld [vmem:[%s1602 + $0xf0] sm:%s1595]
                  %1725 = vst [vmem:[%s1603 + $0x1b0] sm:%s1595] %v1724
                  %v1726 = vld [vmem:[%s1602 + $0xf4] sm:%s1595]
                  %1727 = vst [vmem:[%s1603 + $0x1b4] sm:%s1595] %v1726
                  %v1728 = vld [vmem:[%s1602 + $0xf8] sm:%s1595]
                  %1729 = vst [vmem:[%s1603 + $0x1b8] sm:%s1595] %v1728
                  %v1730 = vld [vmem:[%s1602 + $0xfc] sm:%s1595]
                  %1731 = vst [vmem:[%s1603 + $0x1bc] sm:%s1595] %v1730
                  %v1732 = vld [vmem:[%s1602 + $0x100] sm:%s1595]
                  %1733 = vst [vmem:[%s1603 + $0x200] sm:%s1595] %v1732
                  %v1734 = vld [vmem:[%s1602 + $0x104] sm:%s1595]
                  %1735 = vst [vmem:[%s1603 + $0x204] sm:%s1595] %v1734
                  %v1736 = vld [vmem:[%s1602 + $0x108] sm:%s1595]
                  %1737 = vst [vmem:[%s1603 + $0x208] sm:%s1595] %v1736
                  %v1738 = vld [vmem:[%s1602 + $0x10c] sm:%s1595]
                  %1739 = vst [vmem:[%s1603 + $0x20c] sm:%s1595] %v1738
                  %v1740 = vld [vmem:[%s1602 + $0x110] sm:%s1595]
                  %1741 = vst [vmem:[%s1603 + $0x210] sm:%s1595] %v1740
                  %v1742 = vld [vmem:[%s1602 + $0x114] sm:%s1595]
                  %1743 = vst [vmem:[%s1603 + $0x214] sm:%s1595] %v1742
                  %v1744 = vld [vmem:[%s1602 + $0x118] sm:%s1595]
                  %1745 = vst [vmem:[%s1603 + $0x218] sm:%s1595] %v1744
                  %v1746 = vld [vmem:[%s1602 + $0x11c] sm:%s1595]
                  %1747 = vst [vmem:[%s1603 + $0x21c] sm:%s1595] %v1746
                  %v1748 = vld [vmem:[%s1602 + $0x120] sm:%s1595]
                  %1749 = vst [vmem:[%s1603 + $0x220] sm:%s1595] %v1748
                  %v1750 = vld [vmem:[%s1602 + $0x124] sm:%s1595]
                  %1751 = vst [vmem:[%s1603 + $0x224] sm:%s1595] %v1750
                  %v1752 = vld [vmem:[%s1602 + $0x128] sm:%s1595]
                  %1753 = vst [vmem:[%s1603 + $0x228] sm:%s1595] %v1752
                  %v1754 = vld [vmem:[%s1602 + $0x12c] sm:%s1595]
                  %1755 = vst [vmem:[%s1603 + $0x22c] sm:%s1595] %v1754
                  %v1756 = vld [vmem:[%s1602 + $0x130] sm:%s1595]
                  %1757 = vst [vmem:[%s1603 + $0x230] sm:%s1595] %v1756
                  %v1758 = vld [vmem:[%s1602 + $0x134] sm:%s1595]
                  %1759 = vst [vmem:[%s1603 + $0x234] sm:%s1595] %v1758
                  %v1760 = vld [vmem:[%s1602 + $0x138] sm:%s1595]
                  %1761 = vst [vmem:[%s1603 + $0x238] sm:%s1595] %v1760
                  %v1762 = vld [vmem:[%s1602 + $0x13c] sm:%s1595]
                  %1763 = vst [vmem:[%s1603 + $0x23c] sm:%s1595] %v1762
                  %v1764 = vld [vmem:[%s1602 + $0x140] sm:%s1595]
                  %1765 = vst [vmem:[%s1603 + $0x280] sm:%s1595] %v1764
                  %v1766 = vld [vmem:[%s1602 + $0x144] sm:%s1595]
                  %1767 = vst [vmem:[%s1603 + $0x284] sm:%s1595] %v1766
                  %v1768 = vld [vmem:[%s1602 + $0x148] sm:%s1595]
                  %1769 = vst [vmem:[%s1603 + $0x288] sm:%s1595] %v1768
                  %v1770 = vld [vmem:[%s1602 + $0x14c] sm:%s1595]
                  %1771 = vst [vmem:[%s1603 + $0x28c] sm:%s1595] %v1770
                  %v1772 = vld [vmem:[%s1602 + $0x150] sm:%s1595]
                  %1773 = vst [vmem:[%s1603 + $0x290] sm:%s1595] %v1772
                  %v1774 = vld [vmem:[%s1602 + $0x154] sm:%s1595]
                  %1775 = vst [vmem:[%s1603 + $0x294] sm:%s1595] %v1774
                  %v1776 = vld [vmem:[%s1602 + $0x158] sm:%s1595]
                  %1777 = vst [vmem:[%s1603 + $0x298] sm:%s1595] %v1776
                  %v1778 = vld [vmem:[%s1602 + $0x15c] sm:%s1595]
                  %1779 = vst [vmem:[%s1603 + $0x29c] sm:%s1595] %v1778
                  %v1780 = vld [vmem:[%s1602 + $0x160] sm:%s1595]
                  %1781 = vst [vmem:[%s1603 + $0x2a0] sm:%s1595] %v1780
                  %v1782 = vld [vmem:[%s1602 + $0x164] sm:%s1595]
                  %1783 = vst [vmem:[%s1603 + $0x2a4] sm:%s1595] %v1782
                  %v1784 = vld [vmem:[%s1602 + $0x168] sm:%s1595]
                  %1785 = vst [vmem:[%s1603 + $0x2a8] sm:%s1595] %v1784
                  %v1786 = vld [vmem:[%s1602 + $0x16c] sm:%s1595]
                  %1787 = vst [vmem:[%s1603 + $0x2ac] sm:%s1595] %v1786
                  %v1788 = vld [vmem:[%s1602 + $0x170] sm:%s1595]
                  %1789 = vst [vmem:[%s1603 + $0x2b0] sm:%s1595] %v1788
                  %v1790 = vld [vmem:[%s1602 + $0x174] sm:%s1595]
                  %1791 = vst [vmem:[%s1603 + $0x2b4] sm:%s1595] %v1790
                  %v1792 = vld [vmem:[%s1602 + $0x178] sm:%s1595]
                  %1793 = vst [vmem:[%s1603 + $0x2b8] sm:%s1595] %v1792
                  %v1794 = vld [vmem:[%s1602 + $0x17c] sm:%s1595]
                  %1795 = vst [vmem:[%s1603 + $0x2bc] sm:%s1595] %v1794
                  %v1796 = vld [vmem:[%s1602 + $0x180] sm:%s1595]
                  %1797 = vst [vmem:[%s1603 + $0x300] sm:%s1595] %v1796
                  %v1798 = vld [vmem:[%s1602 + $0x184] sm:%s1595]
                  %1799 = vst [vmem:[%s1603 + $0x304] sm:%s1595] %v1798
                  %v1800 = vld [vmem:[%s1602 + $0x188] sm:%s1595]
                  %1801 = vst [vmem:[%s1603 + $0x308] sm:%s1595] %v1800
                  %v1802 = vld [vmem:[%s1602 + $0x18c] sm:%s1595]
                  %1803 = vst [vmem:[%s1603 + $0x30c] sm:%s1595] %v1802
                  %v1804 = vld [vmem:[%s1602 + $0x190] sm:%s1595]
                  %1805 = vst [vmem:[%s1603 + $0x310] sm:%s1595] %v1804
                  %v1806 = vld [vmem:[%s1602 + $0x194] sm:%s1595]
                  %1807 = vst [vmem:[%s1603 + $0x314] sm:%s1595] %v1806
                  %v1808 = vld [vmem:[%s1602 + $0x198] sm:%s1595]
                  %1809 = vst [vmem:[%s1603 + $0x318] sm:%s1595] %v1808
                  %v1810 = vld [vmem:[%s1602 + $0x19c] sm:%s1595]
                  %1811 = vst [vmem:[%s1603 + $0x31c] sm:%s1595] %v1810
                  %v1812 = vld [vmem:[%s1602 + $0x1a0] sm:%s1595]
                  %1813 = vst [vmem:[%s1603 + $0x320] sm:%s1595] %v1812
                  %v1814 = vld [vmem:[%s1602 + $0x1a4] sm:%s1595]
                  %1815 = vst [vmem:[%s1603 + $0x324] sm:%s1595] %v1814
                  %v1816 = vld [vmem:[%s1602 + $0x1a8] sm:%s1595]
                  %1817 = vst [vmem:[%s1603 + $0x328] sm:%s1595] %v1816
                  %v1818 = vld [vmem:[%s1602 + $0x1ac] sm:%s1595]
                  %1819 = vst [vmem:[%s1603 + $0x32c] sm:%s1595] %v1818
                  %v1820 = vld [vmem:[%s1602 + $0x1b0] sm:%s1595]
                  %1821 = vst [vmem:[%s1603 + $0x330] sm:%s1595] %v1820
                  %v1822 = vld [vmem:[%s1602 + $0x1b4] sm:%s1595]
                  %1823 = vst [vmem:[%s1603 + $0x334] sm:%s1595] %v1822
                  %v1824 = vld [vmem:[%s1602 + $0x1b8] sm:%s1595]
                  %1825 = vst [vmem:[%s1603 + $0x338] sm:%s1595] %v1824
                  %v1826 = vld [vmem:[%s1602 + $0x1bc] sm:%s1595]
                  %1827 = vst [vmem:[%s1603 + $0x33c] sm:%s1595] %v1826
                  %v1828 = vld [vmem:[%s1602 + $0x1c0] sm:%s1595]
                  %1829 = vst [vmem:[%s1603 + $0x380] sm:%s1595] %v1828
                  %v1830 = vld [vmem:[%s1602 + $0x1c4] sm:%s1595]
                  %1831 = vst [vmem:[%s1603 + $0x384] sm:%s1595] %v1830
                  %v1832 = vld [vmem:[%s1602 + $0x1c8] sm:%s1595]
                  %1833 = vst [vmem:[%s1603 + $0x388] sm:%s1595] %v1832
                  %v1834 = vld [vmem:[%s1602 + $0x1cc] sm:%s1595]
                  %1835 = vst [vmem:[%s1603 + $0x38c] sm:%s1595] %v1834
                  %v1836 = vld [vmem:[%s1602 + $0x1d0] sm:%s1595]
                  %1837 = vst [vmem:[%s1603 + $0x390] sm:%s1595] %v1836
                  %v1838 = vld [vmem:[%s1602 + $0x1d4] sm:%s1595]
                  %1839 = vst [vmem:[%s1603 + $0x394] sm:%s1595] %v1838
                  %v1840 = vld [vmem:[%s1602 + $0x1d8] sm:%s1595]
                  %1841 = vst [vmem:[%s1603 + $0x398] sm:%s1595] %v1840
                  %v1842 = vld [vmem:[%s1602 + $0x1dc] sm:%s1595]
                  %1843 = vst [vmem:[%s1603 + $0x39c] sm:%s1595] %v1842
                  %v1844 = vld [vmem:[%s1602 + $0x1e0] sm:%s1595]
                  %1845 = vst [vmem:[%s1603 + $0x3a0] sm:%s1595] %v1844
                  %v1846 = vld [vmem:[%s1602 + $0x1e4] sm:%s1595]
                  %1847 = vst [vmem:[%s1603 + $0x3a4] sm:%s1595] %v1846
                  %v1848 = vld [vmem:[%s1602 + $0x1e8] sm:%s1595]
                  %1849 = vst [vmem:[%s1603 + $0x3a8] sm:%s1595] %v1848
                  %v1850 = vld [vmem:[%s1602 + $0x1ec] sm:%s1595]
                  %1851 = vst [vmem:[%s1603 + $0x3ac] sm:%s1595] %v1850
                  %v1852 = vld [vmem:[%s1602 + $0x1f0] sm:%s1595]
                  %1853 = vst [vmem:[%s1603 + $0x3b0] sm:%s1595] %v1852
                  %v1854 = vld [vmem:[%s1602 + $0x1f4] sm:%s1595]
                  %1855 = vst [vmem:[%s1603 + $0x3b4] sm:%s1595] %v1854
                  %v1856 = vld [vmem:[%s1602 + $0x1f8] sm:%s1595]
                  %1857 = vst [vmem:[%s1603 + $0x3b8] sm:%s1595] %v1856
                  %v1858 = vld [vmem:[%s1602 + $0x1fc] sm:%s1595]
                  %1859 = vst [vmem:[%s1603 + $0x3bc] sm:%s1595] %v1858
                $region75: #{tpu_custom_call.1} parent=62 // loop_footer
                  %s1601 = sadd.s32 1, %s1597
                $region76: #{tpu_custom_call.1} parent=62 // loop_footer_branch
                  %1596 = sbr.rel target = $region72
                $region77: #{tpu_custom_call.1} parent=62 // loop_exit
                  _
              $region63: #{tpu_custom_call.1} parent=47 // pred_fallthru
                _
            $region48: #{tpu_custom_call.1} parent=43 // pred_fallthru
              _
            // Predicated region
            $region49: #{tpu_custom_call.1} parent=43 // pred_check
              _
            $region50: #{tpu_custom_call.1} parent=43 // pred_check_branch
              %1317 = sbr.rel (0) target = $region52
            $region51: #{tpu_custom_call.1} parent=43 // pred_region
              %s1319 = ssub.s32 16, 1
              loop: start=0, step=1, limit=1
              $region53: #{tpu_custom_call.1} parent=51 // loop_pre_header
                _
              $region54: #{tpu_custom_call.1} parent=51 // loop_header
                %s1321 = sphi 0, %s1325
                %p1322 = scmp.ge.s32.totalorder %s1321, 1
                %s1326 = sphi %s1295, %s1295
                %s1327 = sphi %s1311, %s1311
              $region55: #{tpu_custom_call.1} parent=51 // loop_header_branch
                %1324 = sbr.rel (%p1322) target = $region59
              $region56: #{tpu_custom_call.1} parent=51 // loop_body
                %v1328 = vld [vmem:[%s1326] sm:%s1319]
                %1329 = vst [vmem:[%s1327] sm:%s1319] %v1328
                %v1330 = vld [vmem:[%s1326 + $0x4] sm:%s1319]
                %1331 = vst [vmem:[%s1327 + $0x4] sm:%s1319] %v1330
                %v1332 = vld [vmem:[%s1326 + $0x8] sm:%s1319]
                %1333 = vst [vmem:[%s1327 + $0x8] sm:%s1319] %v1332
                %v1334 = vld [vmem:[%s1326 + $0xc] sm:%s1319]
                %1335 = vst [vmem:[%s1327 + $0xc] sm:%s1319] %v1334
                %v1336 = vld [vmem:[%s1326 + $0x10] sm:%s1319]
                %1337 = vst [vmem:[%s1327 + $0x10] sm:%s1319] %v1336
                %v1338 = vld [vmem:[%s1326 + $0x14] sm:%s1319]
                %1339 = vst [vmem:[%s1327 + $0x14] sm:%s1319] %v1338
                %v1340 = vld [vmem:[%s1326 + $0x18] sm:%s1319]
                %1341 = vst [vmem:[%s1327 + $0x18] sm:%s1319] %v1340
                %v1342 = vld [vmem:[%s1326 + $0x1c] sm:%s1319]
                %1343 = vst [vmem:[%s1327 + $0x1c] sm:%s1319] %v1342
                %v1344 = vld [vmem:[%s1326 + $0x20] sm:%s1319]
                %1345 = vst [vmem:[%s1327 + $0x20] sm:%s1319] %v1344
                %v1346 = vld [vmem:[%s1326 + $0x24] sm:%s1319]
                %1347 = vst [vmem:[%s1327 + $0x24] sm:%s1319] %v1346
                %v1348 = vld [vmem:[%s1326 + $0x28] sm:%s1319]
                %1349 = vst [vmem:[%s1327 + $0x28] sm:%s1319] %v1348
                %v1350 = vld [vmem:[%s1326 + $0x2c] sm:%s1319]
                %1351 = vst [vmem:[%s1327 + $0x2c] sm:%s1319] %v1350
                %v1352 = vld [vmem:[%s1326 + $0x30] sm:%s1319]
                %1353 = vst [vmem:[%s1327 + $0x30] sm:%s1319] %v1352
                %v1354 = vld [vmem:[%s1326 + $0x34] sm:%s1319]
                %1355 = vst [vmem:[%s1327 + $0x34] sm:%s1319] %v1354
                %v1356 = vld [vmem:[%s1326 + $0x38] sm:%s1319]
                %1357 = vst [vmem:[%s1327 + $0x38] sm:%s1319] %v1356
                %v1358 = vld [vmem:[%s1326 + $0x3c] sm:%s1319]
                %1359 = vst [vmem:[%s1327 + $0x3c] sm:%s1319] %v1358
                %v1360 = vld [vmem:[%s1326 + $0x40] sm:%s1319]
                %1361 = vst [vmem:[%s1327 + $0x80] sm:%s1319] %v1360
                %v1362 = vld [vmem:[%s1326 + $0x44] sm:%s1319]
                %1363 = vst [vmem:[%s1327 + $0x84] sm:%s1319] %v1362
                %v1364 = vld [vmem:[%s1326 + $0x48] sm:%s1319]
                %1365 = vst [vmem:[%s1327 + $0x88] sm:%s1319] %v1364
                %v1366 = vld [vmem:[%s1326 + $0x4c] sm:%s1319]
                %1367 = vst [vmem:[%s1327 + $0x8c] sm:%s1319] %v1366
                %v1368 = vld [vmem:[%s1326 + $0x50] sm:%s1319]
                %1369 = vst [vmem:[%s1327 + $0x90] sm:%s1319] %v1368
                %v1370 = vld [vmem:[%s1326 + $0x54] sm:%s1319]
                %1371 = vst [vmem:[%s1327 + $0x94] sm:%s1319] %v1370
                %v1372 = vld [vmem:[%s1326 + $0x58] sm:%s1319]
                %1373 = vst [vmem:[%s1327 + $0x98] sm:%s1319] %v1372
                %v1374 = vld [vmem:[%s1326 + $0x5c] sm:%s1319]
                %1375 = vst [vmem:[%s1327 + $0x9c] sm:%s1319] %v1374
                %v1376 = vld [vmem:[%s1326 + $0x60] sm:%s1319]
                %1377 = vst [vmem:[%s1327 + $0xa0] sm:%s1319] %v1376
                %v1378 = vld [vmem:[%s1326 + $0x64] sm:%s1319]
                %1379 = vst [vmem:[%s1327 + $0xa4] sm:%s1319] %v1378
                %v1380 = vld [vmem:[%s1326 + $0x68] sm:%s1319]
                %1381 = vst [vmem:[%s1327 + $0xa8] sm:%s1319] %v1380
                %v1382 = vld [vmem:[%s1326 + $0x6c] sm:%s1319]
                %1383 = vst [vmem:[%s1327 + $0xac] sm:%s1319] %v1382
                %v1384 = vld [vmem:[%s1326 + $0x70] sm:%s1319]
                %1385 = vst [vmem:[%s1327 + $0xb0] sm:%s1319] %v1384
                %v1386 = vld [vmem:[%s1326 + $0x74] sm:%s1319]
                %1387 = vst [vmem:[%s1327 + $0xb4] sm:%s1319] %v1386
                %v1388 = vld [vmem:[%s1326 + $0x78] sm:%s1319]
                %1389 = vst [vmem:[%s1327 + $0xb8] sm:%s1319] %v1388
                %v1390 = vld [vmem:[%s1326 + $0x7c] sm:%s1319]
                %1391 = vst [vmem:[%s1327 + $0xbc] sm:%s1319] %v1390
                %v1392 = vld [vmem:[%s1326 + $0x80] sm:%s1319]
                %1393 = vst [vmem:[%s1327 + $0x100] sm:%s1319] %v1392
                %v1394 = vld [vmem:[%s1326 + $0x84] sm:%s1319]
                %1395 = vst [vmem:[%s1327 + $0x104] sm:%s1319] %v1394
                %v1396 = vld [vmem:[%s1326 + $0x88] sm:%s1319]
                %1397 = vst [vmem:[%s1327 + $0x108] sm:%s1319] %v1396
                %v1398 = vld [vmem:[%s1326 + $0x8c] sm:%s1319]
                %1399 = vst [vmem:[%s1327 + $0x10c] sm:%s1319] %v1398
                %v1400 = vld [vmem:[%s1326 + $0x90] sm:%s1319]
                %1401 = vst [vmem:[%s1327 + $0x110] sm:%s1319] %v1400
                %v1402 = vld [vmem:[%s1326 + $0x94] sm:%s1319]
                %1403 = vst [vmem:[%s1327 + $0x114] sm:%s1319] %v1402
                %v1404 = vld [vmem:[%s1326 + $0x98] sm:%s1319]
                %1405 = vst [vmem:[%s1327 + $0x118] sm:%s1319] %v1404
                %v1406 = vld [vmem:[%s1326 + $0x9c] sm:%s1319]
                %1407 = vst [vmem:[%s1327 + $0x11c] sm:%s1319] %v1406
                %v1408 = vld [vmem:[%s1326 + $0xa0] sm:%s1319]
                %1409 = vst [vmem:[%s1327 + $0x120] sm:%s1319] %v1408
                %v1410 = vld [vmem:[%s1326 + $0xa4] sm:%s1319]
                %1411 = vst [vmem:[%s1327 + $0x124] sm:%s1319] %v1410
                %v1412 = vld [vmem:[%s1326 + $0xa8] sm:%s1319]
                %1413 = vst [vmem:[%s1327 + $0x128] sm:%s1319] %v1412
                %v1414 = vld [vmem:[%s1326 + $0xac] sm:%s1319]
                %1415 = vst [vmem:[%s1327 + $0x12c] sm:%s1319] %v1414
                %v1416 = vld [vmem:[%s1326 + $0xb0] sm:%s1319]
                %1417 = vst [vmem:[%s1327 + $0x130] sm:%s1319] %v1416
                %v1418 = vld [vmem:[%s1326 + $0xb4] sm:%s1319]
                %1419 = vst [vmem:[%s1327 + $0x134] sm:%s1319] %v1418
                %v1420 = vld [vmem:[%s1326 + $0xb8] sm:%s1319]
                %1421 = vst [vmem:[%s1327 + $0x138] sm:%s1319] %v1420
                %v1422 = vld [vmem:[%s1326 + $0xbc] sm:%s1319]
                %1423 = vst [vmem:[%s1327 + $0x13c] sm:%s1319] %v1422
                %v1424 = vld [vmem:[%s1326 + $0xc0] sm:%s1319]
                %1425 = vst [vmem:[%s1327 + $0x180] sm:%s1319] %v1424
                %v1426 = vld [vmem:[%s1326 + $0xc4] sm:%s1319]
                %1427 = vst [vmem:[%s1327 + $0x184] sm:%s1319] %v1426
                %v1428 = vld [vmem:[%s1326 + $0xc8] sm:%s1319]
                %1429 = vst [vmem:[%s1327 + $0x188] sm:%s1319] %v1428
                %v1430 = vld [vmem:[%s1326 + $0xcc] sm:%s1319]
                %1431 = vst [vmem:[%s1327 + $0x18c] sm:%s1319] %v1430
                %v1432 = vld [vmem:[%s1326 + $0xd0] sm:%s1319]
                %1433 = vst [vmem:[%s1327 + $0x190] sm:%s1319] %v1432
                %v1434 = vld [vmem:[%s1326 + $0xd4] sm:%s1319]
                %1435 = vst [vmem:[%s1327 + $0x194] sm:%s1319] %v1434
                %v1436 = vld [vmem:[%s1326 + $0xd8] sm:%s1319]
                %1437 = vst [vmem:[%s1327 + $0x198] sm:%s1319] %v1436
                %v1438 = vld [vmem:[%s1326 + $0xdc] sm:%s1319]
                %1439 = vst [vmem:[%s1327 + $0x19c] sm:%s1319] %v1438
                %v1440 = vld [vmem:[%s1326 + $0xe0] sm:%s1319]
                %1441 = vst [vmem:[%s1327 + $0x1a0] sm:%s1319] %v1440
                %v1442 = vld [vmem:[%s1326 + $0xe4] sm:%s1319]
                %1443 = vst [vmem:[%s1327 + $0x1a4] sm:%s1319] %v1442
                %v1444 = vld [vmem:[%s1326 + $0xe8] sm:%s1319]
                %1445 = vst [vmem:[%s1327 + $0x1a8] sm:%s1319] %v1444
                %v1446 = vld [vmem:[%s1326 + $0xec] sm:%s1319]
                %1447 = vst [vmem:[%s1327 + $0x1ac] sm:%s1319] %v1446
                %v1448 = vld [vmem:[%s1326 + $0xf0] sm:%s1319]
                %1449 = vst [vmem:[%s1327 + $0x1b0] sm:%s1319] %v1448
                %v1450 = vld [vmem:[%s1326 + $0xf4] sm:%s1319]
                %1451 = vst [vmem:[%s1327 + $0x1b4] sm:%s1319] %v1450
                %v1452 = vld [vmem:[%s1326 + $0xf8] sm:%s1319]
                %1453 = vst [vmem:[%s1327 + $0x1b8] sm:%s1319] %v1452
                %v1454 = vld [vmem:[%s1326 + $0xfc] sm:%s1319]
                %1455 = vst [vmem:[%s1327 + $0x1bc] sm:%s1319] %v1454
                %v1456 = vld [vmem:[%s1326 + $0x100] sm:%s1319]
                %1457 = vst [vmem:[%s1327 + $0x200] sm:%s1319] %v1456
                %v1458 = vld [vmem:[%s1326 + $0x104] sm:%s1319]
                %1459 = vst [vmem:[%s1327 + $0x204] sm:%s1319] %v1458
                %v1460 = vld [vmem:[%s1326 + $0x108] sm:%s1319]
                %1461 = vst [vmem:[%s1327 + $0x208] sm:%s1319] %v1460
                %v1462 = vld [vmem:[%s1326 + $0x10c] sm:%s1319]
                %1463 = vst [vmem:[%s1327 + $0x20c] sm:%s1319] %v1462
                %v1464 = vld [vmem:[%s1326 + $0x110] sm:%s1319]
                %1465 = vst [vmem:[%s1327 + $0x210] sm:%s1319] %v1464
                %v1466 = vld [vmem:[%s1326 + $0x114] sm:%s1319]
                %1467 = vst [vmem:[%s1327 + $0x214] sm:%s1319] %v1466
                %v1468 = vld [vmem:[%s1326 + $0x118] sm:%s1319]
                %1469 = vst [vmem:[%s1327 + $0x218] sm:%s1319] %v1468
                %v1470 = vld [vmem:[%s1326 + $0x11c] sm:%s1319]
                %1471 = vst [vmem:[%s1327 + $0x21c] sm:%s1319] %v1470
                %v1472 = vld [vmem:[%s1326 + $0x120] sm:%s1319]
                %1473 = vst [vmem:[%s1327 + $0x220] sm:%s1319] %v1472
                %v1474 = vld [vmem:[%s1326 + $0x124] sm:%s1319]
                %1475 = vst [vmem:[%s1327 + $0x224] sm:%s1319] %v1474
                %v1476 = vld [vmem:[%s1326 + $0x128] sm:%s1319]
                %1477 = vst [vmem:[%s1327 + $0x228] sm:%s1319] %v1476
                %v1478 = vld [vmem:[%s1326 + $0x12c] sm:%s1319]
                %1479 = vst [vmem:[%s1327 + $0x22c] sm:%s1319] %v1478
                %v1480 = vld [vmem:[%s1326 + $0x130] sm:%s1319]
                %1481 = vst [vmem:[%s1327 + $0x230] sm:%s1319] %v1480
                %v1482 = vld [vmem:[%s1326 + $0x134] sm:%s1319]
                %1483 = vst [vmem:[%s1327 + $0x234] sm:%s1319] %v1482
                %v1484 = vld [vmem:[%s1326 + $0x138] sm:%s1319]
                %1485 = vst [vmem:[%s1327 + $0x238] sm:%s1319] %v1484
                %v1486 = vld [vmem:[%s1326 + $0x13c] sm:%s1319]
                %1487 = vst [vmem:[%s1327 + $0x23c] sm:%s1319] %v1486
                %v1488 = vld [vmem:[%s1326 + $0x140] sm:%s1319]
                %1489 = vst [vmem:[%s1327 + $0x280] sm:%s1319] %v1488
                %v1490 = vld [vmem:[%s1326 + $0x144] sm:%s1319]
                %1491 = vst [vmem:[%s1327 + $0x284] sm:%s1319] %v1490
                %v1492 = vld [vmem:[%s1326 + $0x148] sm:%s1319]
                %1493 = vst [vmem:[%s1327 + $0x288] sm:%s1319] %v1492
                %v1494 = vld [vmem:[%s1326 + $0x14c] sm:%s1319]
                %1495 = vst [vmem:[%s1327 + $0x28c] sm:%s1319] %v1494
                %v1496 = vld [vmem:[%s1326 + $0x150] sm:%s1319]
                %1497 = vst [vmem:[%s1327 + $0x290] sm:%s1319] %v1496
                %v1498 = vld [vmem:[%s1326 + $0x154] sm:%s1319]
                %1499 = vst [vmem:[%s1327 + $0x294] sm:%s1319] %v1498
                %v1500 = vld [vmem:[%s1326 + $0x158] sm:%s1319]
                %1501 = vst [vmem:[%s1327 + $0x298] sm:%s1319] %v1500
                %v1502 = vld [vmem:[%s1326 + $0x15c] sm:%s1319]
                %1503 = vst [vmem:[%s1327 + $0x29c] sm:%s1319] %v1502
                %v1504 = vld [vmem:[%s1326 + $0x160] sm:%s1319]
                %1505 = vst [vmem:[%s1327 + $0x2a0] sm:%s1319] %v1504
                %v1506 = vld [vmem:[%s1326 + $0x164] sm:%s1319]
                %1507 = vst [vmem:[%s1327 + $0x2a4] sm:%s1319] %v1506
                %v1508 = vld [vmem:[%s1326 + $0x168] sm:%s1319]
                %1509 = vst [vmem:[%s1327 + $0x2a8] sm:%s1319] %v1508
                %v1510 = vld [vmem:[%s1326 + $0x16c] sm:%s1319]
                %1511 = vst [vmem:[%s1327 + $0x2ac] sm:%s1319] %v1510
                %v1512 = vld [vmem:[%s1326 + $0x170] sm:%s1319]
                %1513 = vst [vmem:[%s1327 + $0x2b0] sm:%s1319] %v1512
                %v1514 = vld [vmem:[%s1326 + $0x174] sm:%s1319]
                %1515 = vst [vmem:[%s1327 + $0x2b4] sm:%s1319] %v1514
                %v1516 = vld [vmem:[%s1326 + $0x178] sm:%s1319]
                %1517 = vst [vmem:[%s1327 + $0x2b8] sm:%s1319] %v1516
                %v1518 = vld [vmem:[%s1326 + $0x17c] sm:%s1319]
                %1519 = vst [vmem:[%s1327 + $0x2bc] sm:%s1319] %v1518
                %v1520 = vld [vmem:[%s1326 + $0x180] sm:%s1319]
                %1521 = vst [vmem:[%s1327 + $0x300] sm:%s1319] %v1520
                %v1522 = vld [vmem:[%s1326 + $0x184] sm:%s1319]
                %1523 = vst [vmem:[%s1327 + $0x304] sm:%s1319] %v1522
                %v1524 = vld [vmem:[%s1326 + $0x188] sm:%s1319]
                %1525 = vst [vmem:[%s1327 + $0x308] sm:%s1319] %v1524
                %v1526 = vld [vmem:[%s1326 + $0x18c] sm:%s1319]
                %1527 = vst [vmem:[%s1327 + $0x30c] sm:%s1319] %v1526
                %v1528 = vld [vmem:[%s1326 + $0x190] sm:%s1319]
                %1529 = vst [vmem:[%s1327 + $0x310] sm:%s1319] %v1528
                %v1530 = vld [vmem:[%s1326 + $0x194] sm:%s1319]
                %1531 = vst [vmem:[%s1327 + $0x314] sm:%s1319] %v1530
                %v1532 = vld [vmem:[%s1326 + $0x198] sm:%s1319]
                %1533 = vst [vmem:[%s1327 + $0x318] sm:%s1319] %v1532
                %v1534 = vld [vmem:[%s1326 + $0x19c] sm:%s1319]
                %1535 = vst [vmem:[%s1327 + $0x31c] sm:%s1319] %v1534
                %v1536 = vld [vmem:[%s1326 + $0x1a0] sm:%s1319]
                %1537 = vst [vmem:[%s1327 + $0x320] sm:%s1319] %v1536
                %v1538 = vld [vmem:[%s1326 + $0x1a4] sm:%s1319]
                %1539 = vst [vmem:[%s1327 + $0x324] sm:%s1319] %v1538
                %v1540 = vld [vmem:[%s1326 + $0x1a8] sm:%s1319]
                %1541 = vst [vmem:[%s1327 + $0x328] sm:%s1319] %v1540
                %v1542 = vld [vmem:[%s1326 + $0x1ac] sm:%s1319]
                %1543 = vst [vmem:[%s1327 + $0x32c] sm:%s1319] %v1542
                %v1544 = vld [vmem:[%s1326 + $0x1b0] sm:%s1319]
                %1545 = vst [vmem:[%s1327 + $0x330] sm:%s1319] %v1544
                %v1546 = vld [vmem:[%s1326 + $0x1b4] sm:%s1319]
                %1547 = vst [vmem:[%s1327 + $0x334] sm:%s1319] %v1546
                %v1548 = vld [vmem:[%s1326 + $0x1b8] sm:%s1319]
                %1549 = vst [vmem:[%s1327 + $0x338] sm:%s1319] %v1548
                %v1550 = vld [vmem:[%s1326 + $0x1bc] sm:%s1319]
                %1551 = vst [vmem:[%s1327 + $0x33c] sm:%s1319] %v1550
                %v1552 = vld [vmem:[%s1326 + $0x1c0] sm:%s1319]
                %1553 = vst [vmem:[%s1327 + $0x380] sm:%s1319] %v1552
                %v1554 = vld [vmem:[%s1326 + $0x1c4] sm:%s1319]
                %1555 = vst [vmem:[%s1327 + $0x384] sm:%s1319] %v1554
                %v1556 = vld [vmem:[%s1326 + $0x1c8] sm:%s1319]
                %1557 = vst [vmem:[%s1327 + $0x388] sm:%s1319] %v1556
                %v1558 = vld [vmem:[%s1326 + $0x1cc] sm:%s1319]
                %1559 = vst [vmem:[%s1327 + $0x38c] sm:%s1319] %v1558
                %v1560 = vld [vmem:[%s1326 + $0x1d0] sm:%s1319]
                %1561 = vst [vmem:[%s1327 + $0x390] sm:%s1319] %v1560
                %v1562 = vld [vmem:[%s1326 + $0x1d4] sm:%s1319]
                %1563 = vst [vmem:[%s1327 + $0x394] sm:%s1319] %v1562
                %v1564 = vld [vmem:[%s1326 + $0x1d8] sm:%s1319]
                %1565 = vst [vmem:[%s1327 + $0x398] sm:%s1319] %v1564
                %v1566 = vld [vmem:[%s1326 + $0x1dc] sm:%s1319]
                %1567 = vst [vmem:[%s1327 + $0x39c] sm:%s1319] %v1566
                %v1568 = vld [vmem:[%s1326 + $0x1e0] sm:%s1319]
                %1569 = vst [vmem:[%s1327 + $0x3a0] sm:%s1319] %v1568
                %v1570 = vld [vmem:[%s1326 + $0x1e4] sm:%s1319]
                %1571 = vst [vmem:[%s1327 + $0x3a4] sm:%s1319] %v1570
                %v1572 = vld [vmem:[%s1326 + $0x1e8] sm:%s1319]
                %1573 = vst [vmem:[%s1327 + $0x3a8] sm:%s1319] %v1572
                %v1574 = vld [vmem:[%s1326 + $0x1ec] sm:%s1319]
                %1575 = vst [vmem:[%s1327 + $0x3ac] sm:%s1319] %v1574
                %v1576 = vld [vmem:[%s1326 + $0x1f0] sm:%s1319]
                %1577 = vst [vmem:[%s1327 + $0x3b0] sm:%s1319] %v1576
                %v1578 = vld [vmem:[%s1326 + $0x1f4] sm:%s1319]
                %1579 = vst [vmem:[%s1327 + $0x3b4] sm:%s1319] %v1578
                %v1580 = vld [vmem:[%s1326 + $0x1f8] sm:%s1319]
                %1581 = vst [vmem:[%s1327 + $0x3b8] sm:%s1319] %v1580
                %v1582 = vld [vmem:[%s1326 + $0x1fc] sm:%s1319]
                %1583 = vst [vmem:[%s1327 + $0x3bc] sm:%s1319] %v1582
              $region57: #{tpu_custom_call.1} parent=51 // loop_footer
                %s1325 = sadd.s32 1, %s1321
              $region58: #{tpu_custom_call.1} parent=51 // loop_footer_branch
                %1320 = sbr.rel target = $region54
              $region59: #{tpu_custom_call.1} parent=51 // loop_exit
                _
            $region52: #{tpu_custom_call.1} parent=43 // pred_fallthru
              _
          $region44: #{tpu_custom_call.1} parent=39 // pred_fallthru
            _
          %1860 = vnop
        $region40: #{tpu_custom_call.1} parent=31 // pred_fallthru
          _
        // Predicated region
        $region78: #{tpu_custom_call.1} parent=31 // pred_check
          %p1861 = pneg %p136
        $region79: #{tpu_custom_call.1} parent=31 // pred_check_branch
          %1863 = sbr.rel (%p1861) target = $region81
        $region80: #{tpu_custom_call.1} parent=31 // pred_region
          %s1865 = ssub.s32 128, 128
          %1866 = vsyncadd %s1297, %s1865
          %s1867 = smul.addr %s24, 128
          %s1868 = scalar_lea.hbm %s4, %s1867
          %s1870 = sshll.u32 %s1300, 4
          %s1871 = int_to_ptr.vmem [resolvable:$true] %s1870
          %1873 = dma.vmem_to_hbm [thread:$0]  %s1871, 128, %s1868, %s1297
        $region81: #{tpu_custom_call.1} parent=31 // pred_fallthru
          _
        // Predicated region
        $region82: #{tpu_custom_call.1} parent=31 // pred_check
          %p1874 = pneg %p162
        $region83: #{tpu_custom_call.1} parent=31 // pred_check_branch
          %1876 = sbr.rel (%p1874) target = $region85
        $region84: #{tpu_custom_call.1} parent=31 // pred_region
          %s1877 = smul.u32 16, %s24
          %s1879 = ssub.s32 2048, 2048
          %1880 = vsyncadd %s1302, %s1879
          %s1881 = smul.addr %s1877, 128
          %s1882 = scalar_lea.hbm %s5, %s1881
          %s1883 = sshll.u32 %s1305, 4
          %s1884 = int_to_ptr.vmem [resolvable:$true] %s1883
          %1889 = dma.vmem_to_hbm [thread:$0]  %s1884, 2048, %s1882, %s1302, 128, 128, 8
        $region85: #{tpu_custom_call.1} parent=31 // pred_fallthru
          _
      $region32: #{tpu_custom_call.1} parent=5 // pred_fallthru
        _
      %p1890 = scmp.le.s32.totalorder 2, %s19
      // Predicated region
      $region86: #{tpu_custom_call.1} parent=5 // pred_check
        %p1891 = pneg %p1890
      $region87: #{tpu_custom_call.1} parent=5 // pred_check_branch
        %1893 = sbr.rel (%p1891) target = $region89
      $region88: #{tpu_custom_call.1} parent=5 // pred_region
        %s1894 = ssub.s32 %s19, 2
        // Predicated region
        $region90: #{tpu_custom_call.1} parent=88 // pred_check
          %p1895 = pneg %p116
        $region91: #{tpu_custom_call.1} parent=88 // pred_check_branch
          %1897 = sbr.rel (%p1895) target = $region93
        $region92: #{tpu_custom_call.1} parent=88 // pred_region
          %s1898 = sand.u32 %s101, 1
          %s1899 = sand.u32 %s101, 1
          %s1900 = smul.addr %s1899, 512
          %s1901 = scalar_lea.vmem [#allocation5], %s1900
        $region93: #{tpu_custom_call.1} parent=88 // pred_fallthru
          _
        // Predicated region
        $region94: #{tpu_custom_call.1} parent=88 // pred_check
          %p1902 = pneg %p142
        $region95: #{tpu_custom_call.1} parent=88 // pred_check_branch
          %1904 = sbr.rel (%p1902) target = $region97
        $region96: #{tpu_custom_call.1} parent=88 // pred_region
          %s1905 = sand.u32 %s127, 1
          %s1906 = scalar_lea.sflag [#allocation4], %s1905
          %s1907 = sand.u32 %s127, 1
          %s1908 = smul.addr %s1907, 8
          %s1909 = scalar_lea.vmem [#allocation6], %s1908
          %1910 = dma.done %s1906, 128
        $region97: #{tpu_custom_call.1} parent=88 // pred_fallthru
          _
        // Predicated region
        $region98: #{tpu_custom_call.1} parent=88 // pred_check
          %p1911 = pneg %p168
        $region99: #{tpu_custom_call.1} parent=88 // pred_check_branch
          %1913 = sbr.rel (%p1911) target = $region101
        $region100: #{tpu_custom_call.1} parent=88 // pred_region
          %s1914 = sand.u32 %s153, 1
          %s1915 = scalar_lea.sflag [#allocation8], %s1914
          %s1916 = sand.u32 %s153, 1
          %s1917 = smul.addr %s1916, 128
          %s1918 = scalar_lea.vmem [#allocation7], %s1917
          %1919 = dma.done %s1915, 2048
        $region101: #{tpu_custom_call.1} parent=88 // pred_fallthru
          _
      $region89: #{tpu_custom_call.1} parent=5 // pred_fallthru
        _
    $region6: #{tpu_custom_call.1} parent=1 // loop_footer
      %s23 = sadd.s32 1, %s19
    $region7: #{tpu_custom_call.1} parent=1 // loop_footer_branch
      %18 = sbr.rel target = $region3
    $region8: #{tpu_custom_call.1} parent=1 // loop_exit
      _
    %1920 = vsyncpa [#allocation3], 1
    %s1921 = scalar_lea.sflag [#allocation3], 1
    %1922 = vsyncpa %s1921, 1
    %1923 = vsyncpa [#allocation4], 1
    %s1924 = scalar_lea.sflag [#allocation4], 1
    %1925 = vsyncpa %s1924, 1
    %1926 = vsyncpa [#allocation8], 1
    %s1927 = scalar_lea.sflag [#allocation8], 1
    %1928 = vsyncpa %s1927, 1

</llo_original>
